<compile_context>
chip_gen: v6e
topology: v6e:2x2x1
jax: 0.10.0
libtpu: 0.0.40
codegen_flags: <defaults>
</compile_context>

<pallas_src>
import functools

import jax
import jax.numpy as jnp
from jax.experimental import pallas as pl
from jax.experimental.pallas import tpu as pltpu


# ----------------------------------------------------------------------------
# Pallas kernel: full encoder stack; one (batch-tile, layer) pair per grid step.
# ----------------------------------------------------------------------------
def _encoder_stack_kernel(
    x_ref,       # (Bt, S, H)  f32   input embeddings (consumed at layer 0 only)
    bias_ref,    # (Bt, 1, S)  f32   additive attention-mask bias (0 keep / -1e30 mask)
    wqkv_ref,    # (1, H, 3H)  bf16  packed [Wq*inv_scale | Wk | Wv], (in, out) layout
    wo_ref,      # (1, H, H)   bf16
    w1_ref,      # (1, H, PF)  bf16
    b1_ref,      # (1, 1, PF)  f32
    w2_ref,      # (1, PF, H)  bf16
    vec_ref,     # (1, 8, H)   f32   rows: [bo, b2, ln1_g, ln1_b, ln2_g, ln2_b, 0, 0]
    out_ref,     # (Bt, S, H)  f32   activation carrier; VMEM-resident across layer steps
    *,
    heads: int,
):
    l = pl.program_id(1)

    @pl.when(l == 0)
    def _load_input():
        out_ref[...] = x_ref[...]

    x3 = out_ref[...]                                # (Bt, S, H) f32 (prev layer output)
    Bt, S, H = x3.shape
    hd = H // heads
    cdt = wqkv_ref.dtype                             # bf16 compute dtype
    x = x3.reshape(Bt * S, H)                        # fat MXU M-dimension

    # --- hoisted small-vector reads (packed biases / LayerNorm params) ---
    vec = vec_ref[0]                                 # (8, H) f32
    bo, b2 = vec[0:1, :], vec[1:2, :]
    ln1_g, ln1_b = vec[2:3, :], vec[3:4, :]
    ln2_g, ln2_b = vec[4:5, :], vec[5:6, :]

    # additive mask bias row; broadcast happens inside the add (no (S,S) materialization)
    bias = bias_ref[...]                             # (Bt, 1, S) f32

    # --- fused QKV projection: one wide MXU matmul over Bt*S rows, f32 accumulation ---
    qkv = jnp.dot(x.astype(cdt), wqkv_ref[0],
                  preferred_element_type=jnp.float32)            # (Bt*S, 3H)
    qkv = qkv.reshape(Bt, S, 3 * H)
    q = qkv[..., 0 * H:1 * H].astype(cdt)            # scale already folded into Wq
    k = qkv[..., 1 * H:2 * H].astype(cdt)
    v = qkv[..., 2 * H:3 * H].astype(cdt)

    # --- per-head attention, concat-free: accumulate ctx_h @ Wo[h-slice] ---
    # TODO(synk): when hd % 128 == 0, assemble ctx lane-slices and do one contract-dim-H
    #             Wo matmul; for large S use a key-blocked online softmax.
    wo = wo_ref[0]                                   # (H, H) bf16
    attn = jnp.zeros((Bt * S, H), jnp.float32)
    for h in range(heads):                           # static unroll (heads is small)
        sl = slice(h * hd, (h + 1) * hd)
        # Q_h @ K_h^T, batched over Bt, no explicit transpose
        sc = jax.lax.dot_general(q[..., sl], k[..., sl],
                                 (((2,), (2,)), ((0,), (0,))),
                                 preferred_element_type=jnp.float32)     # (Bt, S, S)
        sc = sc + bias                                                    # broadcast row
        m = jnp.max(sc, axis=-1, keepdims=True)
        e = jnp.exp(sc - m)
        p = e * pl.reciprocal(jnp.sum(e, axis=-1, keepdims=True), approx=True)
        ctx = jax.lax.dot_general(p.astype(cdt), v[..., sl],
                                  (((2,), (1,)), ((0,), (0,))),
                                  preferred_element_type=jnp.float32)    # (Bt, S, hd)
        attn = attn + jnp.dot(ctx.reshape(Bt * S, hd).astype(cdt), wo[sl, :],
                              preferred_element_type=jnp.float32)
    attn = attn + bo

    # --- residual + LayerNorm 1 (eps = 1e-5, biased variance, torch semantics) ---
    y = x + attn
    mu = jnp.mean(y, axis=-1, keepdims=True)
    var = jnp.mean((y - mu) ** 2, axis=-1, keepdims=True)
    y = (y - mu) * jax.lax.rsqrt(var + 1e-5) * ln1_g + ln1_b

    # --- position-wise FFN: Linear -> ReLU -> Linear ---
    h1 = jnp.dot(y.astype(cdt), w1_ref[0], preferred_element_type=jnp.float32) + b1_ref[0]
    h1 = jnp.maximum(h1, 0.0)
    h2 = jnp.dot(h1.astype(cdt), w2_ref[0], preferred_element_type=jnp.float32) + b2

    # --- residual + LayerNorm 2 ---
    z = y + h2
    mu2 = jnp.mean(z, axis=-1, keepdims=True)
    var2 = jnp.mean((z - mu2) ** 2, axis=-1, keepdims=True)
    z = (z - mu2) * jax.lax.rsqrt(var2 + 1e-5) * ln2_g + ln2_b

    out_ref[...] = z.reshape(Bt, S, H)               # carried to the next layer step


# ----------------------------------------------------------------------------
# Wrapper: single pallas_call over (batch tiles, layers).
# ----------------------------------------------------------------------------
def _pick_vmem_limit_bytes():
    """~48 MiB on v7x (64 MiB physical), ~100 MiB on v5e/v6e (128 MiB physical)."""
    fallback = 48 * 1024 * 1024
    try:
        cap = int(getattr(pltpu.get_tpu_info(), "vmem_capacity_bytes"))
    except Exception:
        return fallback
    return int(min(100 * 1024 * 1024, max(fallback, cap - 16 * 1024 * 1024)))


def _pick_batch_tile(B):
    """Largest divisor of B that keeps >= 2 grid steps on the batch axis (v7x 2-TC split)."""
    if B <= 1:
        return 1
    bt = 1
    for cand in range(1, B + 1):
        if B % cand == 0 and B // cand >= 2:
            bt = cand
    return bt


def encoder_layers_pallas(x, mask_bias, params, *, heads, batch_tile=None):
    """x: (B, S, H) f32 embeddings; mask_bias: (B, 1, S) f32 additive bias."""
    B, S, H = x.shape
    L = params["wqkv"].shape[0]
    PF = params["w1"].shape[-1]
    Bt = batch_tile if batch_tile is not None else _pick_batch_tile(B)
    assert B % Bt == 0

    per_layer = lambda shape: pl.BlockSpec(shape, lambda b, l: (l, 0, 0))

    grid_spec = pltpu.PrefetchScalarGridSpec(
        num_scalar_prefetch=0,
        grid=(B // Bt, L),
        in_specs=[
            pl.BlockSpec((Bt, S, H), lambda b, l: (b, 0, 0)),   # x (constant over l)
            pl.BlockSpec((Bt, 1, S), lambda b, l: (b, 0, 0)),   # mask bias
            per_layer((1, H, 3 * H)),                           # wqkv
            per_layer((1, H, H)),                               # wo
            per_layer((1, H, PF)),                              # w1
            per_layer((1, 1, PF)),                              # b1
            per_layer((1, PF, H)),                              # w2
            per_layer((1, 8, H)),                               # packed biases / LN params
        ],
        # Output block index constant over l -> VMEM-resident activation carrier;
        # HBM writeback only when the batch-tile index changes.
        out_specs=pl.BlockSpec((Bt, S, H), lambda b, l: (b, 0, 0)),
    )

    return pl.pallas_call(
        functools.partial(_encoder_stack_kernel, heads=heads),
        out_shape=jax.ShapeDtypeStruct((B, S, H), jnp.float32),
        grid_spec=grid_spec,
        compiler_params=pltpu.CompilerParams(
            dimension_semantics=("parallel", "arbitrary"),
            vmem_limit_bytes=_pick_vmem_limit_bytes(),
        ),
    )(x, mask_bias, params["wqkv"], params["wo"], params["w1"], params["b1"],
      params["w2"], params["vecs"])


# ----------------------------------------------------------------------------
# Full Encoder forward.
# ----------------------------------------------------------------------------
def encoder_forward(src_ids, src_mask, params, *, heads, batch_tile=None):
    """src_ids: (B, S) int32 token ids; src_mask: (B, 1, S) int32 (1 = keep, 0 = mask)."""
    B, S = src_ids.shape
    pos = jnp.arange(S, dtype=jnp.int32)[None, :]
    # Embedding lookup = plain-JAX gather glue; dropout is identity (eval semantics).
    x = jnp.take(params["word_emb"], src_ids, axis=0) \
        + jnp.take(params["pos_emb"], pos, axis=0)
    # Additive attention-mask bias precomputed ONCE here (not per layer step).
    mask_bias = jnp.where(src_mask == 0, jnp.float32(-1e30), jnp.float32(0.0))
    # TODO(synk): dropout omitted (inference / eval semantics).
    return encoder_layers_pallas(x.astype(jnp.float32), mask_bias.astype(jnp.float32),
                                 params, heads=heads, batch_tile=batch_tile)


# ----------------------------------------------------------------------------
# Deterministic parameter construction (mirrors the torch module's shapes).
# Linear weights are stored transposed to (in, out) and packed per layer;
# 1/sqrt(head_dim) is folded into Wq here (free, wrapper-side).
# ----------------------------------------------------------------------------
def init_params(key, *, input_size, hidden_size, layers, heads, pf_size, max_length):
    H, PF, L = hidden_size, pf_size, layers
    hd = H // heads

    def nrm(k, shape, s=0.02):
        return (s * jax.random.normal(k, shape)).astype(jnp.float32)

    keys = jax.random.split(key, 11)
    wq = nrm(keys[0], (L, H, H)) * jnp.float32(1.0 / (float(hd) ** 0.5))  # scale folded in
    wk = nrm(keys[1], (L, H, H))
    wv = nrm(keys[2], (L, H, H))

    bo = nrm(keys[7], (L, 1, H))
    b2 = nrm(keys[8], (L, 1, H))
    ln1_g = jnp.ones((L, 1, H), jnp.float32)
    ln1_b = jnp.zeros((L, 1, H), jnp.float32)
    ln2_g = jnp.ones((L, 1, H), jnp.float32)
    ln2_b = jnp.zeros((L, 1, H), jnp.float32)
    pad = jnp.zeros((L, 2, H), jnp.float32)

    return {
        "word_emb": nrm(keys[3], (input_size, H)),
        "pos_emb": nrm(keys[4], (max_length, H)),
        # bf16 weights (f32 accumulation happens in-kernel)
        # TODO(synk): fp8 weights + per-channel scales on v7x / int8 on v6e.
        "wqkv": jnp.concatenate([wq, wk, wv], axis=-1).astype(jnp.bfloat16),  # (L,H,3H)
        "wo": nrm(keys[5], (L, H, H)).astype(jnp.bfloat16),
        "w1": nrm(keys[6], (L, H, PF)).astype(jnp.bfloat16),
        "b1": nrm(keys[9], (L, 1, PF)),
        "w2": nrm(keys[10], (L, PF, H)).astype(jnp.bfloat16),
        # packed f32 vectors: [bo, b2, ln1_g, ln1_b, ln2_g, ln2_b, 0, 0]
        "vecs": jnp.concatenate([bo, b2, ln1_g, ln1_b, ln2_g, ln2_b, pad], axis=1),
    }


if __name__ == "__main__":
    # Small, module-consistent shapes.
    INPUT_SIZE = 50      # vocab
    HIDDEN = 32
    LAYERS = 2
    HEADS = 4
    PF_SIZE = 64
    MAX_LEN = 64
    B, S = 2, 8

    key = jax.random.PRNGKey(0)
    pkey, dkey = jax.random.split(key)
    params = init_params(pkey, input_size=INPUT_SIZE, hidden_size=HIDDEN,
                         layers=LAYERS, heads=HEADS, pf_size=PF_SIZE,
                         max_length=MAX_LEN)

    src = jax.random.randint(dkey, (B, S), 0, INPUT_SIZE, dtype=jnp.int32)
    src_mask = jnp.ones((B, 1, S), dtype=jnp.int32)   # all positions valid

    out = encoder_forward(src, src_mask, params, heads=HEADS)
    out = jax.block_until_ready(out)
    assert out.shape == (B, S, HIDDEN) and out.dtype == jnp.float32
    assert bool(jnp.all(jnp.isfinite(out)))
    print("KERNEL_OK")
</pallas_src>

<mosaic_0001>
module attributes {stable_mosaic.version = 11 : i64} {
  func.func @_encoder_stack_kernel(%arg0: i32, %arg1: i32, %arg2: memref<1x8x32xf32, #tpu.memory_space<vmem>>, %arg3: memref<1x1x8xf32, #tpu.memory_space<vmem>>, %arg4: memref<1x32x96xbf16, #tpu.memory_space<vmem>>, %arg5: memref<1x32x32xbf16, #tpu.memory_space<vmem>>, %arg6: memref<1x32x64xbf16, #tpu.memory_space<vmem>>, %arg7: memref<1x1x64xf32, #tpu.memory_space<vmem>>, %arg8: memref<1x64x32xbf16, #tpu.memory_space<vmem>>, %arg9: memref<1x8x32xf32, #tpu.memory_space<vmem>>, %arg10: memref<1x8x32xf32, #tpu.memory_space<vmem>>) attributes {dimension_semantics = [#tpu.dimension_semantics<parallel>, #tpu.dimension_semantics<arbitrary>], iteration_bounds = array<i64: 2, 2>, scalar_prefetch = 0 : i64, scratch_operands = 0 : i64, tpu.core_type = #tpu.core_type<tc>, window_params = [{transform_indices = @transform_0, window_bounds = array<i64: 1, 8, 32>}, {transform_indices = @transform_1, window_bounds = array<i64: 1, 1, 8>}, {transform_indices = @transform_2, window_bounds = array<i64: 1, 32, 96>}, {transform_indices = @transform_3, window_bounds = array<i64: 1, 32, 32>}, {transform_indices = @transform_4, window_bounds = array<i64: 1, 32, 64>}, {transform_indices = @transform_5, window_bounds = array<i64: 1, 1, 64>}, {transform_indices = @transform_6, window_bounds = array<i64: 1, 64, 32>}, {transform_indices = @transform_7, window_bounds = array<i64: 1, 8, 32>}, {transform_indices = @transform_8, window_bounds = array<i64: 1, 8, 32>}]} {
    %c0_i32 = arith.constant 0 : i32
    %0 = arith.cmpi eq, %arg1, %c0_i32 : i32
    %1 = arith.extui %0 : i1 to i32
    %c0_i32_0 = arith.constant 0 : i32
    %2 = arith.cmpi ne, %1, %c0_i32_0 : i32
    scf.if %2 {
      %c0_61 = arith.constant 0 : index
      %c0_62 = arith.constant 0 : index
      %c0_63 = arith.constant 0 : index
      %186 = vector.load %arg2[%c0_61, %c0_62, %c0_63] : memref<1x8x32xf32, #tpu.memory_space<vmem>>, vector<1x8x32xf32>
      %c0_64 = arith.constant 0 : index
      %c0_65 = arith.constant 0 : index
      %c0_66 = arith.constant 0 : index
      %187 = vector.load %arg10[%c0_64, %c0_65, %c0_66] : memref<1x8x32xf32, #tpu.memory_space<vmem>>, vector<1x8x32xf32>
      tpu.vector_store %arg10[%c0_64, %c0_65, %c0_66], %186 {strides = array<i32>} : memref<1x8x32xf32, #tpu.memory_space<vmem>>, vector<1x8x32xf32>,
    } else {
    }
    %c0 = arith.constant 0 : index
    %c0_1 = arith.constant 0 : index
    %c0_2 = arith.constant 0 : index
    %3 = vector.load %arg10[%c0, %c0_1, %c0_2] : memref<1x8x32xf32, #tpu.memory_space<vmem>>, vector<1x8x32xf32>
    %4 = vector.shape_cast %3 : vector<1x8x32xf32> to vector<8x32xf32>
    %c0_3 = arith.constant 0 : index
    %c0_4 = arith.constant 0 : index
    %c0_5 = arith.constant 0 : index
    %5 = vector.load %arg9[%c0_3, %c0_4, %c0_5] : memref<1x8x32xf32, #tpu.memory_space<vmem>>, vector<1x8x32xf32>
    %6 = vector.shape_cast %5 : vector<1x8x32xf32> to vector<8x32xf32>
    %7 = vector.extract_strided_slice %6 {offsets = [0, 0], sizes = [1, 32], strides = [1, 1]} : vector<8x32xf32> to vector<1x32xf32>
    %8 = vector.extract_strided_slice %6 {offsets = [1, 0], sizes = [1, 32], strides = [1, 1]} : vector<8x32xf32> to vector<1x32xf32>
    %9 = vector.extract_strided_slice %6 {offsets = [2, 0], sizes = [1, 32], strides = [1, 1]} : vector<8x32xf32> to vector<1x32xf32>
    %10 = vector.extract_strided_slice %6 {offsets = [3, 0], sizes = [1, 32], strides = [1, 1]} : vector<8x32xf32> to vector<1x32xf32>
    %11 = vector.extract_strided_slice %6 {offsets = [4, 0], sizes = [1, 32], strides = [1, 1]} : vector<8x32xf32> to vector<1x32xf32>
    %12 = vector.extract_strided_slice %6 {offsets = [5, 0], sizes = [1, 32], strides = [1, 1]} : vector<8x32xf32> to vector<1x32xf32>
    %c0_6 = arith.constant 0 : index
    %c0_7 = arith.constant 0 : index
    %c0_8 = arith.constant 0 : index
    %13 = vector.load %arg3[%c0_6, %c0_7, %c0_8] : memref<1x1x8xf32, #tpu.memory_space<vmem>>, vector<1x1x8xf32>
    %14 = arith.truncf %4 : vector<8x32xf32> to vector<8x32xbf16>
    %c0_9 = arith.constant 0 : index
    %c0_10 = arith.constant 0 : index
    %c0_11 = arith.constant 0 : index
    %15 = vector.load %arg4[%c0_9, %c0_10, %c0_11] : memref<1x32x96xbf16, #tpu.memory_space<vmem>>, vector<1x32x96xbf16>
    %16 = vector.shape_cast %15 : vector<1x32x96xbf16> to vector<32x96xbf16>
    %cst = arith.constant dense<0.000000e+00> : vector<8x96xf32>
    %17 = tpu.matmul %14, %16, %cst {dimension_numbers = #tpu.dot_dimension_numbers<[1], [0], [0], [1], [0, 0, 1, 1], [], []>} : vector<8x32xbf16>, vector<32x96xbf16>, vector<8x96xf32> -> vector<8x96xf32>
    %18 = vector.shape_cast %17 : vector<8x96xf32> to vector<1x8x96xf32>
    %19 = vector.extract_strided_slice %18 {offsets = [0, 0, 0], sizes = [1, 8, 32], strides = [1, 1, 1]} : vector<1x8x96xf32> to vector<1x8x32xf32>
    %20 = arith.truncf %19 : vector<1x8x32xf32> to vector<1x8x32xbf16>
    %21 = vector.extract_strided_slice %18 {offsets = [0, 0, 32], sizes = [1, 8, 32], strides = [1, 1, 1]} : vector<1x8x96xf32> to vector<1x8x32xf32>
    %22 = arith.truncf %21 : vector<1x8x32xf32> to vector<1x8x32xbf16>
    %23 = vector.extract_strided_slice %18 {offsets = [0, 0, 64], sizes = [1, 8, 32], strides = [1, 1, 1]} : vector<1x8x96xf32> to vector<1x8x32xf32>
    %24 = arith.truncf %23 : vector<1x8x32xf32> to vector<1x8x32xbf16>
    %c0_12 = arith.constant 0 : index
    %c0_13 = arith.constant 0 : index
    %c0_14 = arith.constant 0 : index
    %25 = vector.load %arg5[%c0_12, %c0_13, %c0_14] : memref<1x32x32xbf16, #tpu.memory_space<vmem>>, vector<1x32x32xbf16>
    %26 = vector.shape_cast %25 : vector<1x32x32xbf16> to vector<32x32xbf16>
    %cst_15 = arith.constant 0.000000e+00 : f32
    %27 = vector.broadcast %cst_15 : f32 to vector<8x32xf32>
    %28 = vector.extract_strided_slice %20 {offsets = [0, 0, 0], sizes = [1, 8, 8], strides = [1, 1, 1]} : vector<1x8x32xbf16> to vector<1x8x8xbf16>
    %29 = vector.extract_strided_slice %22 {offsets = [0, 0, 0], sizes = [1, 8, 8], strides = [1, 1, 1]} : vector<1x8x32xbf16> to vector<1x8x8xbf16>
    %cst_16 = arith.constant dense<0.000000e+00> : vector<1x8x8xf32>
    %30 = tpu.matmul %28, %29, %cst_16 {dimension_numbers = #tpu.dot_dimension_numbers<[2], [2], [1], [1], [0, 0, 0, 1, 1, 1], [0], [0]>} : vector<1x8x8xbf16>, vector<1x8x8xbf16>, vector<1x8x8xf32> -> vector<1x8x8xf32>
    %31 = vector.broadcast %13 : vector<1x1x8xf32> to vector<1x8x8xf32>
    %32 = arith.addf %30, %31 : vector<1x8x8xf32>
    %cst_17 = arith.constant dense<0xFF800000> : vector<1x8xf32>
    %33 = vector.multi_reduction <maximumf>, %32, %cst_17 [2] : vector<1x8x8xf32> to vector<1x8xf32>
    %34 = vector.shape_cast %33 : vector<1x8xf32> to vector<1x8x1xf32>
    %35 = vector.broadcast %34 : vector<1x8x1xf32> to vector<1x8x8xf32>
    %36 = arith.subf %32, %35 : vector<1x8x8xf32>
    %37 = math.exp %36 : vector<1x8x8xf32>
    %cst_18 = arith.constant dense<0.000000e+00> : vector<1x8xf32>
    %38 = vector.multi_reduction <add>, %37, %cst_18 [2] : vector<1x8x8xf32> to vector<1x8xf32>
    %39 = vector.shape_cast %38 : vector<1x8xf32> to vector<1x8x1xf32>
    %40 = tpu.reciprocal %39 {approx = true} : vector<1x8x1xf32> -> vector<1x8x1xf32>
    %41 = vector.broadcast %40 : vector<1x8x1xf32> to vector<1x8x8xf32>
    %42 = arith.mulf %37, %41 : vector<1x8x8xf32>
    %43 = arith.truncf %42 : vector<1x8x8xf32> to vector<1x8x8xbf16>
    %44 = vector.extract_strided_slice %24 {offsets = [0, 0, 0], sizes = [1, 8, 8], strides = [1, 1, 1]} : vector<1x8x32xbf16> to vector<1x8x8xbf16>
    %cst_19 = arith.constant dense<0.000000e+00> : vector<1x8x8xf32>
    %45 = tpu.matmul %43, %44, %cst_19 {dimension_numbers = #tpu.dot_dimension_numbers<[2], [1], [1], [2], [0, 0, 0, 1, 1, 2], [0], [0]>} : vector<1x8x8xbf16>, vector<1x8x8xbf16>, vector<1x8x8xf32> -> vector<1x8x8xf32>
    %46 = vector.shape_cast %45 : vector<1x8x8xf32> to vector<8x8xf32>
    %47 = arith.truncf %46 : vector<8x8xf32> to vector<8x8xbf16>
    %48 = vector.extract_strided_slice %26 {offsets = [0, 0], sizes = [8, 32], strides = [1, 1]} : vector<32x32xbf16> to vector<8x32xbf16>
    %cst_20 = arith.constant dense<0.000000e+00> : vector<8x32xf32>
    %49 = tpu.matmul %47, %48, %cst_20 {dimension_numbers = #tpu.dot_dimension_numbers<[1], [0], [0], [1], [0, 0, 1, 1], [], []>} : vector<8x8xbf16>, vector<8x32xbf16>, vector<8x32xf32> -> vector<8x32xf32>
    %50 = arith.addf %27, %49 : vector<8x32xf32>
    %51 = vector.extract_strided_slice %20 {offsets = [0, 0, 8], sizes = [1, 8, 8], strides = [1, 1, 1]} : vector<1x8x32xbf16> to vector<1x8x8xbf16>
    %52 = vector.extract_strided_slice %22 {offsets = [0, 0, 8], sizes = [1, 8, 8], strides = [1, 1, 1]} : vector<1x8x32xbf16> to vector<1x8x8xbf16>
    %cst_21 = arith.constant dense<0.000000e+00> : vector<1x8x8xf32>
    %53 = tpu.matmul %51, %52, %cst_21 {dimension_numbers = #tpu.dot_dimension_numbers<[2], [2], [1], [1], [0, 0, 0, 1, 1, 1], [0], [0]>} : vector<1x8x8xbf16>, vector<1x8x8xbf16>, vector<1x8x8xf32> -> vector<1x8x8xf32>
    %54 = vector.broadcast %13 : vector<1x1x8xf32> to vector<1x8x8xf32>
    %55 = arith.addf %53, %54 : vector<1x8x8xf32>
    %cst_22 = arith.constant dense<0xFF800000> : vector<1x8xf32>
    %56 = vector.multi_reduction <maximumf>, %55, %cst_22 [2] : vector<1x8x8xf32> to vector<1x8xf32>
    %57 = vector.shape_cast %56 : vector<1x8xf32> to vector<1x8x1xf32>
    %58 = vector.broadcast %57 : vector<1x8x1xf32> to vector<1x8x8xf32>
    %59 = arith.subf %55, %58 : vector<1x8x8xf32>
    %60 = math.exp %59 : vector<1x8x8xf32>
    %cst_23 = arith.constant dense<0.000000e+00> : vector<1x8xf32>
    %61 = vector.multi_reduction <add>, %60, %cst_23 [2] : vector<1x8x8xf32> to vector<1x8xf32>
    %62 = vector.shape_cast %61 : vector<1x8xf32> to vector<1x8x1xf32>
    %63 = tpu.reciprocal %62 {approx = true} : vector<1x8x1xf32> -> vector<1x8x1xf32>
    %64 = vector.broadcast %63 : vector<1x8x1xf32> to vector<1x8x8xf32>
    %65 = arith.mulf %60, %64 : vector<1x8x8xf32>
    %66 = arith.truncf %65 : vector<1x8x8xf32> to vector<1x8x8xbf16>
    %67 = vector.extract_strided_slice %24 {offsets = [0, 0, 8], sizes = [1, 8, 8], strides = [1, 1, 1]} : vector<1x8x32xbf16> to vector<1x8x8xbf16>
    %cst_24 = arith.constant dense<0.000000e+00> : vector<1x8x8xf32>
    %68 = tpu.matmul %66, %67, %cst_24 {dimension_numbers = #tpu.dot_dimension_numbers<[2], [1], [1], [2], [0, 0, 0, 1, 1, 2], [0], [0]>} : vector<1x8x8xbf16>, vector<1x8x8xbf16>, vector<1x8x8xf32> -> vector<1x8x8xf32>
    %69 = vector.shape_cast %68 : vector<1x8x8xf32> to vector<8x8xf32>
    %70 = arith.truncf %69 : vector<8x8xf32> to vector<8x8xbf16>
    %71 = vector.extract_strided_slice %26 {offsets = [8, 0], sizes = [8, 32], strides = [1, 1]} : vector<32x32xbf16> to vector<8x32xbf16>
    %cst_25 = arith.constant dense<0.000000e+00> : vector<8x32xf32>
    %72 = tpu.matmul %70, %71, %cst_25 {dimension_numbers = #tpu.dot_dimension_numbers<[1], [0], [0], [1], [0, 0, 1, 1], [], []>} : vector<8x8xbf16>, vector<8x32xbf16>, vector<8x32xf32> -> vector<8x32xf32>
    %73 = arith.addf %50, %72 : vector<8x32xf32>
    %74 = vector.extract_strided_slice %20 {offsets = [0, 0, 16], sizes = [1, 8, 8], strides = [1, 1, 1]} : vector<1x8x32xbf16> to vector<1x8x8xbf16>
    %75 = vector.extract_strided_slice %22 {offsets = [0, 0, 16], sizes = [1, 8, 8], strides = [1, 1, 1]} : vector<1x8x32xbf16> to vector<1x8x8xbf16>
    %cst_26 = arith.constant dense<0.000000e+00> : vector<1x8x8xf32>
    %76 = tpu.matmul %74, %75, %cst_26 {dimension_numbers = #tpu.dot_dimension_numbers<[2], [2], [1], [1], [0, 0, 0, 1, 1, 1], [0], [0]>} : vector<1x8x8xbf16>, vector<1x8x8xbf16>, vector<1x8x8xf32> -> vector<1x8x8xf32>
    %77 = vector.broadcast %13 : vector<1x1x8xf32> to vector<1x8x8xf32>
    %78 = arith.addf %76, %77 : vector<1x8x8xf32>
    %cst_27 = arith.constant dense<0xFF800000> : vector<1x8xf32>
    %79 = vector.multi_reduction <maximumf>, %78, %cst_27 [2] : vector<1x8x8xf32> to vector<1x8xf32>
    %80 = vector.shape_cast %79 : vector<1x8xf32> to vector<1x8x1xf32>
    %81 = vector.broadcast %80 : vector<1x8x1xf32> to vector<1x8x8xf32>
    %82 = arith.subf %78, %81 : vector<1x8x8xf32>
    %83 = math.exp %82 : vector<1x8x8xf32>
    %cst_28 = arith.constant dense<0.000000e+00> : vector<1x8xf32>
    %84 = vector.multi_reduction <add>, %83, %cst_28 [2] : vector<1x8x8xf32> to vector<1x8xf32>
    %85 = vector.shape_cast %84 : vector<1x8xf32> to vector<1x8x1xf32>
    %86 = tpu.reciprocal %85 {approx = true} : vector<1x8x1xf32> -> vector<1x8x1xf32>
    %87 = vector.broadcast %86 : vector<1x8x1xf32> to vector<1x8x8xf32>
    %88 = arith.mulf %83, %87 : vector<1x8x8xf32>
    %89 = arith.truncf %88 : vector<1x8x8xf32> to vector<1x8x8xbf16>
    %90 = vector.extract_strided_slice %24 {offsets = [0, 0, 16], sizes = [1, 8, 8], strides = [1, 1, 1]} : vector<1x8x32xbf16> to vector<1x8x8xbf16>
    %cst_29 = arith.constant dense<0.000000e+00> : vector<1x8x8xf32>
    %91 = tpu.matmul %89, %90, %cst_29 {dimension_numbers = #tpu.dot_dimension_numbers<[2], [1], [1], [2], [0, 0, 0, 1, 1, 2], [0], [0]>} : vector<1x8x8xbf16>, vector<1x8x8xbf16>, vector<1x8x8xf32> -> vector<1x8x8xf32>
    %92 = vector.shape_cast %91 : vector<1x8x8xf32> to vector<8x8xf32>
    %93 = arith.truncf %92 : vector<8x8xf32> to vector<8x8xbf16>
    %94 = vector.extract_strided_slice %26 {offsets = [16, 0], sizes = [8, 32], strides = [1, 1]} : vector<32x32xbf16> to vector<8x32xbf16>
    %cst_30 = arith.constant dense<0.000000e+00> : vector<8x32xf32>
    %95 = tpu.matmul %93, %94, %cst_30 {dimension_numbers = #tpu.dot_dimension_numbers<[1], [0], [0], [1], [0, 0, 1, 1], [], []>} : vector<8x8xbf16>, vector<8x32xbf16>, vector<8x32xf32> -> vector<8x32xf32>
    %96 = arith.addf %73, %95 : vector<8x32xf32>
    %97 = vector.extract_strided_slice %20 {offsets = [0, 0, 24], sizes = [1, 8, 8], strides = [1, 1, 1]} : vector<1x8x32xbf16> to vector<1x8x8xbf16>
    %98 = vector.extract_strided_slice %22 {offsets = [0, 0, 24], sizes = [1, 8, 8], strides = [1, 1, 1]} : vector<1x8x32xbf16> to vector<1x8x8xbf16>
    %cst_31 = arith.constant dense<0.000000e+00> : vector<1x8x8xf32>
    %99 = tpu.matmul %97, %98, %cst_31 {dimension_numbers = #tpu.dot_dimension_numbers<[2], [2], [1], [1], [0, 0, 0, 1, 1, 1], [0], [0]>} : vector<1x8x8xbf16>, vector<1x8x8xbf16>, vector<1x8x8xf32> -> vector<1x8x8xf32>
    %100 = vector.broadcast %13 : vector<1x1x8xf32> to vector<1x8x8xf32>
    %101 = arith.addf %99, %100 : vector<1x8x8xf32>
    %cst_32 = arith.constant dense<0xFF800000> : vector<1x8xf32>
    %102 = vector.multi_reduction <maximumf>, %101, %cst_32 [2] : vector<1x8x8xf32> to vector<1x8xf32>
    %103 = vector.shape_cast %102 : vector<1x8xf32> to vector<1x8x1xf32>
    %104 = vector.broadcast %103 : vector<1x8x1xf32> to vector<1x8x8xf32>
    %105 = arith.subf %101, %104 : vector<1x8x8xf32>
    %106 = math.exp %105 : vector<1x8x8xf32>
    %cst_33 = arith.constant dense<0.000000e+00> : vector<1x8xf32>
    %107 = vector.multi_reduction <add>, %106, %cst_33 [2] : vector<1x8x8xf32> to vector<1x8xf32>
    %108 = vector.shape_cast %107 : vector<1x8xf32> to vector<1x8x1xf32>
    %109 = tpu.reciprocal %108 {approx = true} : vector<1x8x1xf32> -> vector<1x8x1xf32>
    %110 = vector.broadcast %109 : vector<1x8x1xf32> to vector<1x8x8xf32>
    %111 = arith.mulf %106, %110 : vector<1x8x8xf32>
    %112 = arith.truncf %111 : vector<1x8x8xf32> to vector<1x8x8xbf16>
    %113 = vector.extract_strided_slice %24 {offsets = [0, 0, 24], sizes = [1, 8, 8], strides = [1, 1, 1]} : vector<1x8x32xbf16> to vector<1x8x8xbf16>
    %cst_34 = arith.constant dense<0.000000e+00> : vector<1x8x8xf32>
    %114 = tpu.matmul %112, %113, %cst_34 {dimension_numbers = #tpu.dot_dimension_numbers<[2], [1], [1], [2], [0, 0, 0, 1, 1, 2], [0], [0]>} : vector<1x8x8xbf16>, vector<1x8x8xbf16>, vector<1x8x8xf32> -> vector<1x8x8xf32>
    %115 = vector.shape_cast %114 : vector<1x8x8xf32> to vector<8x8xf32>
    %116 = arith.truncf %115 : vector<8x8xf32> to vector<8x8xbf16>
    %117 = vector.extract_strided_slice %26 {offsets = [24, 0], sizes = [8, 32], strides = [1, 1]} : vector<32x32xbf16> to vector<8x32xbf16>
    %cst_35 = arith.constant dense<0.000000e+00> : vector<8x32xf32>
    %118 = tpu.matmul %116, %117, %cst_35 {dimension_numbers = #tpu.dot_dimension_numbers<[1], [0], [0], [1], [0, 0, 1, 1], [], []>} : vector<8x8xbf16>, vector<8x32xbf16>, vector<8x32xf32> -> vector<8x32xf32>
    %119 = arith.addf %96, %118 : vector<8x32xf32>
    %120 = vector.broadcast %7 : vector<1x32xf32> to vector<8x32xf32>
    %121 = arith.addf %119, %120 : vector<8x32xf32>
    %122 = arith.addf %4, %121 : vector<8x32xf32>
    %cst_36 = arith.constant dense<0.000000e+00> : vector<8xf32>
    %123 = vector.multi_reduction <add>, %122, %cst_36 [1] : vector<8x32xf32> to vector<8xf32>
    %124 = vector.shape_cast %123 : vector<8xf32> to vector<8x1xf32>
    %cst_37 = arith.constant 3.200000e+01 : f32
    %125 = vector.broadcast %cst_37 : f32 to vector<8x1xf32>
    %126 = arith.divf %124, %125 : vector<8x1xf32>
    %127 = vector.broadcast %126 : vector<8x1xf32> to vector<8x32xf32>
    %128 = arith.subf %122, %127 : vector<8x32xf32>
    %129 = arith.mulf %128, %128 : vector<8x32xf32>
    %cst_38 = arith.constant dense<0.000000e+00> : vector<8xf32>
    %130 = vector.multi_reduction <add>, %129, %cst_38 [1] : vector<8x32xf32> to vector<8xf32>
    %131 = vector.shape_cast %130 : vector<8xf32> to vector<8x1xf32>
    %cst_39 = arith.constant 3.200000e+01 : f32
    %132 = vector.broadcast %cst_39 : f32 to vector<8x1xf32>
    %133 = arith.divf %131, %132 : vector<8x1xf32>
    %134 = vector.broadcast %126 : vector<8x1xf32> to vector<8x32xf32>
    %135 = arith.subf %122, %134 : vector<8x32xf32>
    %cst_40 = arith.constant 9.99999974E-6 : f32
    %136 = vector.broadcast %cst_40 : f32 to vector<8x1xf32>
    %137 = arith.addf %133, %136 : vector<8x1xf32>
    %138 = math.rsqrt %137 : vector<8x1xf32>
    %139 = vector.broadcast %138 : vector<8x1xf32> to vector<8x32xf32>
    %140 = arith.mulf %135, %139 : vector<8x32xf32>
    %141 = vector.broadcast %9 : vector<1x32xf32> to vector<8x32xf32>
    %142 = arith.mulf %140, %141 : vector<8x32xf32>
    %143 = vector.broadcast %10 : vector<1x32xf32> to vector<8x32xf32>
    %144 = arith.addf %142, %143 : vector<8x32xf32>
    %145 = arith.truncf %144 : vector<8x32xf32> to vector<8x32xbf16>
    %c0_41 = arith.constant 0 : index
    %c0_42 = arith.constant 0 : index
    %c0_43 = arith.constant 0 : index
    %146 = vector.load %arg6[%c0_41, %c0_42, %c0_43] : memref<1x32x64xbf16, #tpu.memory_space<vmem>>, vector<1x32x64xbf16>
    %147 = vector.shape_cast %146 : vector<1x32x64xbf16> to vector<32x64xbf16>
    %cst_44 = arith.constant dense<0.000000e+00> : vector<8x64xf32>
    %148 = tpu.matmul %145, %147, %cst_44 {dimension_numbers = #tpu.dot_dimension_numbers<[1], [0], [0], [1], [0, 0, 1, 1], [], []>} : vector<8x32xbf16>, vector<32x64xbf16>, vector<8x64xf32> -> vector<8x64xf32>
    %c0_45 = arith.constant 0 : index
    %c0_46 = arith.constant 0 : index
    %c0_47 = arith.constant 0 : index
    %149 = vector.load %arg7[%c0_45, %c0_46, %c0_47] : memref<1x1x64xf32, #tpu.memory_space<vmem>>, vector<1x1x64xf32>
    %150 = vector.shape_cast %149 : vector<1x1x64xf32> to vector<1x64xf32>
    %151 = vector.broadcast %150 : vector<1x64xf32> to vector<8x64xf32>
    %152 = arith.addf %148, %151 : vector<8x64xf32>
    %cst_48 = arith.constant 0.000000e+00 : f32
    %153 = vector.broadcast %cst_48 : f32 to vector<8x64xf32>
    %154 = arith.maximumf %152, %153 : vector<8x64xf32>
    %155 = arith.truncf %154 : vector<8x64xf32> to vector<8x64xbf16>
    %c0_49 = arith.constant 0 : index
    %c0_50 = arith.constant 0 : index
    %c0_51 = arith.constant 0 : index
    %156 = vector.load %arg8[%c0_49, %c0_50, %c0_51] : memref<1x64x32xbf16, #tpu.memory_space<vmem>>, vector<1x64x32xbf16>
    %157 = vector.shape_cast %156 : vector<1x64x32xbf16> to vector<64x32xbf16>
    %cst_52 = arith.constant dense<0.000000e+00> : vector<8x32xf32>
    %158 = tpu.matmul %155, %157, %cst_52 {dimension_numbers = #tpu.dot_dimension_numbers<[1], [0], [0], [1], [0, 0, 1, 1], [], []>} : vector<8x64xbf16>, vector<64x32xbf16>, vector<8x32xf32> -> vector<8x32xf32>
    %159 = vector.broadcast %8 : vector<1x32xf32> to vector<8x32xf32>
    %160 = arith.addf %158, %159 : vector<8x32xf32>
    %161 = arith.addf %144, %160 : vector<8x32xf32>
    %cst_53 = arith.constant dense<0.000000e+00> : vector<8xf32>
    %162 = vector.multi_reduction <add>, %161, %cst_53 [1] : vector<8x32xf32> to vector<8xf32>
    %163 = vector.shape_cast %162 : vector<8xf32> to vector<8x1xf32>
    %cst_54 = arith.constant 3.200000e+01 : f32
    %164 = vector.broadcast %cst_54 : f32 to vector<8x1xf32>
    %165 = arith.divf %163, %164 : vector<8x1xf32>
    %166 = vector.broadcast %165 : vector<8x1xf32> to vector<8x32xf32>
    %167 = arith.subf %161, %166 : vector<8x32xf32>
    %168 = arith.mulf %167, %167 : vector<8x32xf32>
    %cst_55 = arith.constant dense<0.000000e+00> : vector<8xf32>
    %169 = vector.multi_reduction <add>, %168, %cst_55 [1] : vector<8x32xf32> to vector<8xf32>
    %170 = vector.shape_cast %169 : vector<8xf32> to vector<8x1xf32>
    %cst_56 = arith.constant 3.200000e+01 : f32
    %171 = vector.broadcast %cst_56 : f32 to vector<8x1xf32>
    %172 = arith.divf %170, %171 : vector<8x1xf32>
    %173 = vector.broadcast %165 : vector<8x1xf32> to vector<8x32xf32>
    %174 = arith.subf %161, %173 : vector<8x32xf32>
    %cst_57 = arith.constant 9.99999974E-6 : f32
    %175 = vector.broadcast %cst_57 : f32 to vector<8x1xf32>
    %176 = arith.addf %172, %175 : vector<8x1xf32>
    %177 = math.rsqrt %176 : vector<8x1xf32>
    %178 = vector.broadcast %177 : vector<8x1xf32> to vector<8x32xf32>
    %179 = arith.mulf %174, %178 : vector<8x32xf32>
    %180 = vector.broadcast %11 : vector<1x32xf32> to vector<8x32xf32>
    %181 = arith.mulf %179, %180 : vector<8x32xf32>
    %182 = vector.broadcast %12 : vector<1x32xf32> to vector<8x32xf32>
    %183 = arith.addf %181, %182 : vector<8x32xf32>
    %184 = vector.shape_cast %183 : vector<8x32xf32> to vector<1x8x32xf32>
    %c0_58 = arith.constant 0 : index
    %c0_59 = arith.constant 0 : index
    %c0_60 = arith.constant 0 : index
    %185 = vector.load %arg10[%c0_58, %c0_59, %c0_60] : memref<1x8x32xf32, #tpu.memory_space<vmem>>, vector<1x8x32xf32>
    tpu.vector_store %arg10[%c0_58, %c0_59, %c0_60], %184 {strides = array<i32>} : memref<1x8x32xf32, #tpu.memory_space<vmem>>, vector<1x8x32xf32>,
    return
  }
  func.func @transform_0(%arg0: i32, %arg1: i32) -> (i32, i32, i32) {
    %c0_i32 = arith.constant 0 : i32
    %c0_i32_0 = arith.constant 0 : i32
    %c0_i32_1 = arith.constant 0 : i32
    return %arg0, %c0_i32, %c0_i32_0 : i32, i32, i32
  }
  func.func @transform_1(%arg0: i32, %arg1: i32) -> (i32, i32, i32) {
    %c0_i32 = arith.constant 0 : i32
    %c0_i32_0 = arith.constant 0 : i32
    %c0_i32_1 = arith.constant 0 : i32
    return %arg0, %c0_i32, %c0_i32_0 : i32, i32, i32
  }
  func.func @transform_2(%arg0: i32, %arg1: i32) -> (i32, i32, i32) {
    %c0_i32 = arith.constant 0 : i32
    %c0_i32_0 = arith.constant 0 : i32
    %c0_i32_1 = arith.constant 0 : i32
    return %arg1, %c0_i32, %c0_i32_0 : i32, i32, i32
  }
  func.func @transform_3(%arg0: i32, %arg1: i32) -> (i32, i32, i32) {
    %c0_i32 = arith.constant 0 : i32
    %c0_i32_0 = arith.constant 0 : i32
    %c0_i32_1 = arith.constant 0 : i32
    return %arg1, %c0_i32, %c0_i32_0 : i32, i32, i32
  }
  func.func @transform_4(%arg0: i32, %arg1: i32) -> (i32, i32, i32) {
    %c0_i32 = arith.constant 0 : i32
    %c0_i32_0 = arith.constant 0 : i32
    %c0_i32_1 = arith.constant 0 : i32
    return %arg1, %c0_i32, %c0_i32_0 : i32, i32, i32
  }
  func.func @transform_5(%arg0: i32, %arg1: i32) -> (i32, i32, i32) {
    %c0_i32 = arith.constant 0 : i32
    %c0_i32_0 = arith.constant 0 : i32
    %c0_i32_1 = arith.constant 0 : i32
    return %arg1, %c0_i32, %c0_i32_0 : i32, i32, i32
  }
  func.func @transform_6(%arg0: i32, %arg1: i32) -> (i32, i32, i32) {
    %c0_i32 = arith.constant 0 : i32
    %c0_i32_0 = arith.constant 0 : i32
    %c0_i32_1 = arith.constant 0 : i32
    return %arg1, %c0_i32, %c0_i32_0 : i32, i32, i32
  }
  func.func @transform_7(%arg0: i32, %arg1: i32) -> (i32, i32, i32) {
    %c0_i32 = arith.constant 0 : i32
    %c0_i32_0 = arith.constant 0 : i32
    %c0_i32_1 = arith.constant 0 : i32
    return %arg1, %c0_i32, %c0_i32_0 : i32, i32, i32
  }
  func.func @transform_8(%arg0: i32, %arg1: i32) -> (i32, i32, i32) {
    %c0_i32 = arith.constant 0 : i32
    %c0_i32_0 = arith.constant 0 : i32
    %c0_i32_1 = arith.constant 0 : i32
    return %arg0, %c0_i32, %c0_i32_0 : i32, i32, i32
  }
}

</mosaic_0001>

<llo_original>
// kernel: tpu_custom_call.1
$region0: #{tpu_custom_call.1}
  #allocation0 [shape = 'u32[]', space=smem, size = 0x4, offset = 0x4, fixed_abs, tag = 'smem constant byte address 0x4 - core index']
  #allocation1 [shape = 'u32[144,128]{1,0:T(1,128)}', space=vmem, size = 0x12000, scoped, tag = 'internal scratch']
  %s0 = inlined_call_operand.hbm [shape: f32[2,8,32], index: 0, kind: input, shape index: {}]
  %s1 = inlined_call_operand.hbm [shape: f32[2,1,8], index: 1, kind: input, shape index: {}]
  %s2 = inlined_call_operand.vmem [shape: bf16[2,32,96], index: 2, kind: input, shape index: {}]
  %s3 = inlined_call_operand.vmem [shape: bf16[2,32,32], index: 3, kind: input, shape index: {}]
  %s4 = inlined_call_operand.vmem [shape: bf16[2,32,64], index: 4, kind: input, shape index: {}]
  %s5 = inlined_call_operand.vmem [shape: f32[2,1,64], index: 5, kind: input, shape index: {}]
  %s6 = inlined_call_operand.vmem [shape: bf16[2,64,32], index: 6, kind: input, shape index: {}]
  %s7 = inlined_call_operand.hbm [shape: f32[2,8,32], index: 7, kind: input, shape index: {}]
  %s8 = inlined_call_operand.hbm [shape: f32[2,8,32], index: 8, kind: output, shape index: {}]
  %s9 = sld [smem:[#allocation0]]
  $region81: #{tpu_custom_call.1} parent=0
    _
  %s11 = ssub.s32 1, %s9
  %s12 = scalar_select 0, %s11, %s9
  $region1: #{tpu_custom_call.1} parent=0
    #allocation2 [shape = 'u8[8192]{0}', space=vmem, size = 0x2000, scoped, tag = 'input window, operand 0']
    #allocation3 [shape = 's32[2]{0}', space=sflag, size = 0x8, scoped, tag = 'scoped memory for tpu_custom_call.1']
    #allocation4 [shape = 's32[2]{0}', space=sflag, size = 0x8, scoped, tag = 'scoped memory for tpu_custom_call.1']
    #allocation5 [shape = 'u8[1024]{0}', space=vmem, size = 0x400, scoped, tag = 'input window, operand 1']
    #allocation6 [shape = 's32[2]{0}', space=sflag, size = 0x8, scoped, tag = 'scoped memory for tpu_custom_call.1']
    #allocation7 [shape = 'u8[8192]{0}', space=vmem, size = 0x2000, scoped, tag = 'input window, operand 7']
    #allocation8 [shape = 'u8[8192]{0}', space=vmem, size = 0x2000, scoped, tag = 'output window, operand 0']
    %13 = vsyncpa [#allocation3], 0
    %s14 = scalar_lea.sflag [#allocation3], 1
    %15 = vsyncpa %s14, 0
    %16 = vsyncpa [#allocation6], 0
    %s17 = scalar_lea.sflag [#allocation6], 1
    %18 = vsyncpa %s17, 0
    %19 = vsyncpa [#allocation4], 0
    %s20 = scalar_lea.sflag [#allocation4], 1
    %21 = vsyncpa %s20, 0
    loop: start=0, step=1, limit=6
    $region2: #{tpu_custom_call.1} parent=1 // loop_pre_header
      _
    $region3: #{tpu_custom_call.1} parent=1 // loop_header
      %s23 = sphi 0, %s27
      %p24 = scmp.ge.s32.totalorder %s23, 6
      %s30 = sphi 0, %s42
      %s31 = sphi 0, %s38
      %s32 = sphi 0, %s30
      %s33 = sphi 0, %s31
      %s34 = sphi 0, %s32
      %s35 = sphi 0, %s33
      %s45 = sphi 0, %s47
      %s48 = sphi 0, %s45
      %s49 = sphi 0, %s48
      %s65 = sphi 0, %s49
      %s71 = sphi 0, %s73
      %s74 = sphi 0, %s71
      %s75 = sphi 0, %s74
      %s91 = sphi 0, %s75
      %s97 = sphi 0, %s99
      %s100 = sphi 0, %s97
      %s101 = sphi 0, %s100
      %s117 = sphi 0, %s101
      %s123 = sphi 0, %s125
      %s126 = sphi 0, %s123
      %s127 = sphi 0, %s126
      %s143 = sphi 0, %s127
      %s149 = sphi 0, %s151
      %s152 = sphi 0, %s149
      %s153 = sphi 0, %s152
      %s169 = sphi 0, %s153
      %s175 = sphi 0, %s177
      %s178 = sphi 0, %s175
      %s179 = sphi 0, %s178
      %s195 = sphi 0, %s179
      %s201 = sphi 0, %s203
      %s204 = sphi 0, %s201
      %s205 = sphi 0, %s204
      %s221 = sphi 0, %s205
      %s227 = sphi 0, %s229
      %s230 = sphi 0, %s227
      %s231 = sphi 0, %s230
      %s247 = sphi 0, %s231
      %s253 = sphi 0, %s255
      %s256 = sphi 0, %s253
      %s257 = sphi 0, %s256
      %s273 = sphi 0, %s257
    $region4: #{tpu_custom_call.1} parent=1 // loop_header_branch
      %26 = sbr.rel (%p24) target = $region8
    $region5: #{tpu_custom_call.1} parent=1 // loop_body
      %s28 = ssub.s32 %s23, 1
      %s29 = ssub.s32 %s23, 2
      %s36 = sadd.s32 1, %s31
      %p37 = scmp.ge.s32.totalorder %s36, 2
      %s38 = scalar_select %p37, 0, %s36
      %s39 = sadd.s32 1, %s30
      %s40 = scalar_select %p37, %s39, %s30
      %p41 = scmp.ge.s32.totalorder %s40, 2
      %s42 = scalar_select %p41, 0, %s40
      %s43 = ssub.s32 %s30, %s42
      %p44 = scmp.eq.s32.totalorder %s43, 0
      %s46 = sadd.s32 %s45, 1
      %s47 = scalar_select %p44, %s45, %s46
      %p50 = pneg %p44
      %p51 = scmp.eq.s32.totalorder %s23, 3
      %p52 = por %p50, %p51
      %p53 = scmp.ne.s32.totalorder %s45, %s48
      %p54 = scmp.eq.s32.totalorder %s23, 0
      %p55 = por %p53, %p54
      %p56 = scmp.ne.s32.totalorder %s45, %s48
      %p57 = scmp.eq.s32.totalorder %s28, 3
      %p58 = por %p56, %p57
      %p59 = scmp.ne.s32.totalorder %s48, %s49
      %p60 = scmp.eq.s32.totalorder %s28, 0
      %p61 = por %p59, %p60
      %p62 = scmp.ne.s32.totalorder %s48, %s49
      %p63 = scmp.eq.s32.totalorder %s29, 3
      %p64 = por %p62, %p63
      %p66 = scmp.ne.s32.totalorder %s49, %s65
      %p67 = scmp.eq.s32.totalorder %s29, 0
      %p68 = por %p66, %p67
      %s69 = ssub.s32 %s30, %s42
      %p70 = scmp.eq.s32.totalorder %s69, 0
      %s72 = sadd.s32 %s71, 1
      %s73 = scalar_select %p70, %s71, %s72
      %p76 = pneg %p70
      %p77 = scmp.eq.s32.totalorder %s23, 3
      %p78 = por %p76, %p77
      %p79 = scmp.ne.s32.totalorder %s71, %s74
      %p80 = scmp.eq.s32.totalorder %s23, 0
      %p81 = por %p79, %p80
      %p82 = scmp.ne.s32.totalorder %s71, %s74
      %p83 = scmp.eq.s32.totalorder %s28, 3
      %p84 = por %p82, %p83
      %p85 = scmp.ne.s32.totalorder %s74, %s75
      %p86 = scmp.eq.s32.totalorder %s28, 0
      %p87 = por %p85, %p86
      %p88 = scmp.ne.s32.totalorder %s74, %s75
      %p89 = scmp.eq.s32.totalorder %s29, 3
      %p90 = por %p88, %p89
      %p92 = scmp.ne.s32.totalorder %s75, %s91
      %p93 = scmp.eq.s32.totalorder %s29, 0
      %p94 = por %p92, %p93
      %s95 = ssub.s32 %s31, %s38
      %p96 = scmp.eq.s32.totalorder %s95, 0
      %s98 = sadd.s32 %s97, 1
      %s99 = scalar_select %p96, %s97, %s98
      %p102 = pneg %p96
      %p103 = scmp.eq.s32.totalorder %s23, 3
      %p104 = por %p102, %p103
      %p105 = scmp.ne.s32.totalorder %s97, %s100
      %p106 = scmp.eq.s32.totalorder %s23, 0
      %p107 = por %p105, %p106
      %p108 = scmp.ne.s32.totalorder %s97, %s100
      %p109 = scmp.eq.s32.totalorder %s28, 3
      %p110 = por %p108, %p109
      %p111 = scmp.ne.s32.totalorder %s100, %s101
      %p112 = scmp.eq.s32.totalorder %s28, 0
      %p113 = por %p111, %p112
      %p114 = scmp.ne.s32.totalorder %s100, %s101
      %p115 = scmp.eq.s32.totalorder %s29, 3
      %p116 = por %p114, %p115
      %p118 = scmp.ne.s32.totalorder %s101, %s117
      %p119 = scmp.eq.s32.totalorder %s29, 0
      %p120 = por %p118, %p119
      %s121 = ssub.s32 %s31, %s38
      %p122 = scmp.eq.s32.totalorder %s121, 0
      %s124 = sadd.s32 %s123, 1
      %s125 = scalar_select %p122, %s123, %s124
      %p128 = pneg %p122
      %p129 = scmp.eq.s32.totalorder %s23, 3
      %p130 = por %p128, %p129
      %p131 = scmp.ne.s32.totalorder %s123, %s126
      %p132 = scmp.eq.s32.totalorder %s23, 0
      %p133 = por %p131, %p132
      %p134 = scmp.ne.s32.totalorder %s123, %s126
      %p135 = scmp.eq.s32.totalorder %s28, 3
      %p136 = por %p134, %p135
      %p137 = scmp.ne.s32.totalorder %s126, %s127
      %p138 = scmp.eq.s32.totalorder %s28, 0
      %p139 = por %p137, %p138
      %p140 = scmp.ne.s32.totalorder %s126, %s127
      %p141 = scmp.eq.s32.totalorder %s29, 3
      %p142 = por %p140, %p141
      %p144 = scmp.ne.s32.totalorder %s127, %s143
      %p145 = scmp.eq.s32.totalorder %s29, 0
      %p146 = por %p144, %p145
      %s147 = ssub.s32 %s31, %s38
      %p148 = scmp.eq.s32.totalorder %s147, 0
      %s150 = sadd.s32 %s149, 1
      %s151 = scalar_select %p148, %s149, %s150
      %p154 = pneg %p148
      %p155 = scmp.eq.s32.totalorder %s23, 3
      %p156 = por %p154, %p155
      %p157 = scmp.ne.s32.totalorder %s149, %s152
      %p158 = scmp.eq.s32.totalorder %s23, 0
      %p159 = por %p157, %p158
      %p160 = scmp.ne.s32.totalorder %s149, %s152
      %p161 = scmp.eq.s32.totalorder %s28, 3
      %p162 = por %p160, %p161
      %p163 = scmp.ne.s32.totalorder %s152, %s153
      %p164 = scmp.eq.s32.totalorder %s28, 0
      %p165 = por %p163, %p164
      %p166 = scmp.ne.s32.totalorder %s152, %s153
      %p167 = scmp.eq.s32.totalorder %s29, 3
      %p168 = por %p166, %p167
      %p170 = scmp.ne.s32.totalorder %s153, %s169
      %p171 = scmp.eq.s32.totalorder %s29, 0
      %p172 = por %p170, %p171
      %s173 = ssub.s32 %s31, %s38
      %p174 = scmp.eq.s32.totalorder %s173, 0
      %s176 = sadd.s32 %s175, 1
      %s177 = scalar_select %p174, %s175, %s176
      %p180 = pneg %p174
      %p181 = scmp.eq.s32.totalorder %s23, 3
      %p182 = por %p180, %p181
      %p183 = scmp.ne.s32.totalorder %s175, %s178
      %p184 = scmp.eq.s32.totalorder %s23, 0
      %p185 = por %p183, %p184
      %p186 = scmp.ne.s32.totalorder %s175, %s178
      %p187 = scmp.eq.s32.totalorder %s28, 3
      %p188 = por %p186, %p187
      %p189 = scmp.ne.s32.totalorder %s178, %s179
      %p190 = scmp.eq.s32.totalorder %s28, 0
      %p191 = por %p189, %p190
      %p192 = scmp.ne.s32.totalorder %s178, %s179
      %p193 = scmp.eq.s32.totalorder %s29, 3
      %p194 = por %p192, %p193
      %p196 = scmp.ne.s32.totalorder %s179, %s195
      %p197 = scmp.eq.s32.totalorder %s29, 0
      %p198 = por %p196, %p197
      %s199 = ssub.s32 %s31, %s38
      %p200 = scmp.eq.s32.totalorder %s199, 0
      %s202 = sadd.s32 %s201, 1
      %s203 = scalar_select %p200, %s201, %s202
      %p206 = pneg %p200
      %p207 = scmp.eq.s32.totalorder %s23, 3
      %p208 = por %p206, %p207
      %p209 = scmp.ne.s32.totalorder %s201, %s204
      %p210 = scmp.eq.s32.totalorder %s23, 0
      %p211 = por %p209, %p210
      %p212 = scmp.ne.s32.totalorder %s201, %s204
      %p213 = scmp.eq.s32.totalorder %s28, 3
      %p214 = por %p212, %p213
      %p215 = scmp.ne.s32.totalorder %s204, %s205
      %p216 = scmp.eq.s32.totalorder %s28, 0
      %p217 = por %p215, %p216
      %p218 = scmp.ne.s32.totalorder %s204, %s205
      %p219 = scmp.eq.s32.totalorder %s29, 3
      %p220 = por %p218, %p219
      %p222 = scmp.ne.s32.totalorder %s205, %s221
      %p223 = scmp.eq.s32.totalorder %s29, 0
      %p224 = por %p222, %p223
      %s225 = ssub.s32 %s31, %s38
      %p226 = scmp.eq.s32.totalorder %s225, 0
      %s228 = sadd.s32 %s227, 1
      %s229 = scalar_select %p226, %s227, %s228
      %p232 = pneg %p226
      %p233 = scmp.eq.s32.totalorder %s23, 3
      %p234 = por %p232, %p233
      %p235 = scmp.ne.s32.totalorder %s227, %s230
      %p236 = scmp.eq.s32.totalorder %s23, 0
      %p237 = por %p235, %p236
      %p238 = scmp.ne.s32.totalorder %s227, %s230
      %p239 = scmp.eq.s32.totalorder %s28, 3
      %p240 = por %p238, %p239
      %p241 = scmp.ne.s32.totalorder %s230, %s231
      %p242 = scmp.eq.s32.totalorder %s28, 0
      %p243 = por %p241, %p242
      %p244 = scmp.ne.s32.totalorder %s230, %s231
      %p245 = scmp.eq.s32.totalorder %s29, 3
      %p246 = por %p244, %p245
      %p248 = scmp.ne.s32.totalorder %s231, %s247
      %p249 = scmp.eq.s32.totalorder %s29, 0
      %p250 = por %p248, %p249
      %s251 = ssub.s32 %s30, %s42
      %p252 = scmp.eq.s32.totalorder %s251, 0
      %s254 = sadd.s32 %s253, 1
      %s255 = scalar_select %p252, %s253, %s254
      %p258 = pneg %p252
      %p259 = scmp.eq.s32.totalorder %s23, 3
      %p260 = por %p258, %p259
      %p261 = scmp.ne.s32.totalorder %s253, %s256
      %p262 = scmp.eq.s32.totalorder %s23, 0
      %p263 = por %p261, %p262
      %p264 = scmp.ne.s32.totalorder %s253, %s256
      %p265 = scmp.eq.s32.totalorder %s28, 3
      %p266 = por %p264, %p265
      %p267 = scmp.ne.s32.totalorder %s256, %s257
      %p268 = scmp.eq.s32.totalorder %s28, 0
      %p269 = por %p267, %p268
      %p270 = scmp.ne.s32.totalorder %s256, %s257
      %p271 = scmp.eq.s32.totalorder %s29, 3
      %p272 = por %p270, %p271
      %p274 = scmp.ne.s32.totalorder %s257, %s273
      %p275 = scmp.eq.s32.totalorder %s29, 0
      %p276 = por %p274, %p275
      %p277 = scmp.le.s32.totalorder 1, %s23
      %p278 = scmp.lt.s32.totalorder %s23, 5
      %p279 = pnand %p277, %p278
      %p280 = pneg %p279
      // Predicated region
      $region9: #{tpu_custom_call.1} parent=5 // pred_check
        _
      $region10: #{tpu_custom_call.1} parent=5 // pred_check_branch
        %282 = sbr.rel (%p279) target = $region12
      $region11: #{tpu_custom_call.1} parent=5 // pred_region
        %s283 = ssub.s32 %s23, 1
      $region12: #{tpu_custom_call.1} parent=5 // pred_fallthru
        _
      %p284 = scmp.lt.s32.totalorder %s23, 4
      // Predicated region
      $region13: #{tpu_custom_call.1} parent=5 // pred_check
        %p285 = pneg %p284
      $region14: #{tpu_custom_call.1} parent=5 // pred_check_branch
        %287 = sbr.rel (%p285) target = $region16
      $region15: #{tpu_custom_call.1} parent=5 // pred_region
        // Predicated region
        $region17: #{tpu_custom_call.1} parent=15 // pred_check
          %p288 = pneg %p55
        $region18: #{tpu_custom_call.1} parent=15 // pred_check_branch
          %290 = sbr.rel (%p288) target = $region20
        $region19: #{tpu_custom_call.1} parent=15 // pred_region
          %s291 = sand.u32 %s45, 1
          %s292 = scalar_lea.sflag [#allocation3], %s291
          %s293 = sand.u32 %s45, 1
          %s294 = smul.addr %s293, 8
          %s295 = scalar_lea.vmem [#allocation2], %s294
          %s297 = ssub.s32 128, 128
          %298 = vsyncadd %s292, %s297
          %s299 = smul.addr %s30, 128
          %s300 = scalar_lea.hbm %s0, %s299
          %s302 = sshll.u32 %s295, 4
          %s303 = int_to_ptr.vmem [resolvable:$true] %s302
          %305 = dma.hbm_to_vmem [thread:$0]  %s300, 128, %s303, %s292
        $region20: #{tpu_custom_call.1} parent=15 // pred_fallthru
          _
        // Predicated region
        $region21: #{tpu_custom_call.1} parent=15 // pred_check
          %p306 = pneg %p81
        $region22: #{tpu_custom_call.1} parent=15 // pred_check_branch
          %308 = sbr.rel (%p306) target = $region24
        $region23: #{tpu_custom_call.1} parent=15 // pred_region
          %s309 = sand.u32 %s23, 1
          %s310 = scalar_lea.sflag [#allocation6], %s309
          %s311 = sand.u32 %s71, 1
          %s312 = scalar_lea.vmem [#allocation5], %s311
          %s314 = ssub.s32 16, 16
          %315 = vsyncadd %s310, %s314
          %s316 = smul.addr %s30, 16
          %s317 = scalar_lea.hbm %s1, %s316
          %s319 = sshll.u32 %s312, 4
          %s320 = int_to_ptr.vmem [resolvable:$true] %s319
          %322 = dma.hbm_to_vmem [thread:$0]  %s317, 16, %s320, %s310
        $region24: #{tpu_custom_call.1} parent=15 // pred_fallthru
          _
        // Predicated region
        $region25: #{tpu_custom_call.1} parent=15 // pred_check
          %p323 = pneg %p107
        $region26: #{tpu_custom_call.1} parent=15 // pred_check_branch
          %325 = sbr.rel (%p323) target = $region28
        $region27: #{tpu_custom_call.1} parent=15 // pred_region
          %p326 = scmp.lt.s32.totalorder %s31, 1
          %s327 = scalar_select %p326, %s31, 1
          %s328 = smul.addr %s327, 4
          %s329 = smul.addr %s328, 4
          %s330 = scalar_lea.vmem %s2, %s329
        $region28: #{tpu_custom_call.1} parent=15 // pred_fallthru
          _
        // Predicated region
        $region29: #{tpu_custom_call.1} parent=15 // pred_check
          %p331 = pneg %p133
        $region30: #{tpu_custom_call.1} parent=15 // pred_check_branch
          %333 = sbr.rel (%p331) target = $region32
        $region31: #{tpu_custom_call.1} parent=15 // pred_region
          %p334 = scmp.lt.s32.totalorder %s31, 1
          %s335 = scalar_select %p334, %s31, 1
          %s336 = smul.addr %s335, 4
          %s337 = smul.addr %s336, 4
          %s338 = scalar_lea.vmem %s3, %s337
        $region32: #{tpu_custom_call.1} parent=15 // pred_fallthru
          _
        // Predicated region
        $region33: #{tpu_custom_call.1} parent=15 // pred_check
          %p339 = pneg %p159
        $region34: #{tpu_custom_call.1} parent=15 // pred_check_branch
          %341 = sbr.rel (%p339) target = $region36
        $region35: #{tpu_custom_call.1} parent=15 // pred_region
          %p342 = scmp.lt.s32.totalorder %s31, 1
          %s343 = scalar_select %p342, %s31, 1
          %s344 = smul.addr %s343, 4
          %s345 = smul.addr %s344, 4
          %s346 = scalar_lea.vmem %s4, %s345
        $region36: #{tpu_custom_call.1} parent=15 // pred_fallthru
          _
        // Predicated region
        $region37: #{tpu_custom_call.1} parent=15 // pred_check
          %p347 = pneg %p185
        $region38: #{tpu_custom_call.1} parent=15 // pred_check_branch
          %349 = sbr.rel (%p347) target = $region40
        $region39: #{tpu_custom_call.1} parent=15 // pred_region
          %p350 = scmp.lt.s32.totalorder %s31, 1
          %s351 = scalar_select %p350, %s31, 1
          %s352 = scalar_lea.vmem %s5, %s351
        $region40: #{tpu_custom_call.1} parent=15 // pred_fallthru
          _
        // Predicated region
        $region41: #{tpu_custom_call.1} parent=15 // pred_check
          %p353 = pneg %p211
        $region42: #{tpu_custom_call.1} parent=15 // pred_check_branch
          %355 = sbr.rel (%p353) target = $region44
        $region43: #{tpu_custom_call.1} parent=15 // pred_region
          %p356 = scmp.lt.s32.totalorder %s31, 1
          %s357 = scalar_select %p356, %s31, 1
          %s358 = smul.addr %s357, 8
          %s359 = smul.addr %s358, 4
          %s360 = scalar_lea.vmem %s6, %s359
        $region44: #{tpu_custom_call.1} parent=15 // pred_fallthru
          _
        // Predicated region
        $region45: #{tpu_custom_call.1} parent=15 // pred_check
          %p361 = pneg %p237
        $region46: #{tpu_custom_call.1} parent=15 // pred_check_branch
          %363 = sbr.rel (%p361) target = $region48
        $region47: #{tpu_custom_call.1} parent=15 // pred_region
          %s364 = sand.u32 %s23, 1
          %s365 = scalar_lea.sflag [#allocation6], %s364
          %s366 = sand.u32 %s227, 1
          %s367 = smul.addr %s366, 8
          %s368 = scalar_lea.vmem [#allocation7], %s367
          %s370 = ssub.s32 128, 128
          %371 = vsyncadd %s365, %s370
          %s372 = smul.addr %s31, 128
          %s373 = scalar_lea.hbm %s7, %s372
          %s375 = sshll.u32 %s368, 4
          %s376 = int_to_ptr.vmem [resolvable:$true] %s375
          %378 = dma.hbm_to_vmem [thread:$0]  %s373, 128, %s376, %s365
        $region48: #{tpu_custom_call.1} parent=15 // pred_fallthru
          _
      $region16: #{tpu_custom_call.1} parent=5 // pred_fallthru
        _
      %p379 = scmp.le.s32.totalorder 1, %s23
      %p380 = scmp.lt.s32.totalorder %s23, 5
      %p381 = pnand %p379, %p380
      %p382 = pneg %p381
      // Predicated region
      $region49: #{tpu_custom_call.1} parent=5 // pred_check
        _
      $region50: #{tpu_custom_call.1} parent=5 // pred_check_branch
        %384 = sbr.rel (%p381) target = $region52
      $region51: #{tpu_custom_call.1} parent=5 // pred_region
        %s385 = ssub.s32 %s23, 1
        %s386 = sand.u32 %s48, 1
        %s387 = scalar_lea.sflag [#allocation3], %s386
        %s388 = sand.u32 %s48, 1
        %s389 = smul.addr %s388, 8
        %s390 = scalar_lea.vmem [#allocation2], %s389
        // Predicated region
        $region53: #{tpu_custom_call.1} parent=51 // pred_check
          %p391 = pneg %p61
        $region54: #{tpu_custom_call.1} parent=51 // pred_check_branch
          %393 = sbr.rel (%p391) target = $region56
        $region55: #{tpu_custom_call.1} parent=51 // pred_region
          %394 = dma.done %s387, 128
        $region56: #{tpu_custom_call.1} parent=51 // pred_fallthru
          _
        %s395 = sand.u32 %s28, 1
        %s396 = scalar_lea.sflag [#allocation6], %s395
        %s397 = sand.u32 %s74, 1
        %s398 = scalar_lea.vmem [#allocation5], %s397
        // Predicated region
        $region57: #{tpu_custom_call.1} parent=51 // pred_check
          %p399 = pneg %p87
        $region58: #{tpu_custom_call.1} parent=51 // pred_check_branch
          %401 = sbr.rel (%p399) target = $region60
        $region59: #{tpu_custom_call.1} parent=51 // pred_region
          %402 = dma.done %s396, 16
        $region60: #{tpu_custom_call.1} parent=51 // pred_fallthru
          _
        %s403 = sand.u32 %s28, 1
        %s404 = scalar_lea.sflag [#allocation6], %s403
        %s405 = sand.u32 %s230, 1
        %s406 = smul.addr %s405, 8
        %s407 = scalar_lea.vmem [#allocation7], %s406
        // Predicated region
        $region61: #{tpu_custom_call.1} parent=51 // pred_check
          %p408 = pneg %p243
        $region62: #{tpu_custom_call.1} parent=51 // pred_check_branch
          %410 = sbr.rel (%p408) target = $region64
        $region63: #{tpu_custom_call.1} parent=51 // pred_region
          %411 = dma.done %s404, 128
        $region64: #{tpu_custom_call.1} parent=51 // pred_fallthru
          _
        %s412 = sand.u32 %s48, 1
        %s413 = scalar_lea.sflag [#allocation3], %s412
        %s414 = sand.u32 %s48, 1
        %s415 = smul.addr %s414, 8
        %s416 = scalar_lea.vmem [#allocation2], %s415
        %p417 = pneg %p61
        %p418 = pneg %p58
        %s419 = sand.u32 %s28, 1
        %s420 = scalar_lea.sflag [#allocation6], %s419
        %s421 = sand.u32 %s74, 1
        %s422 = scalar_lea.vmem [#allocation5], %s421
        %p423 = pneg %p87
        %p424 = pneg %p84
        %p425 = scmp.lt.s32.totalorder %s33, 1
        %s426 = scalar_select %p425, %s33, 1
        %s427 = smul.addr %s426, 4
        %s428 = smul.addr %s427, 4
        %s429 = scalar_lea.vmem %s2, %s428
        %p430 = pneg %p113
        %p431 = pneg %p110
        %p432 = scmp.lt.s32.totalorder %s33, 1
        %s433 = scalar_select %p432, %s33, 1
        %s434 = smul.addr %s433, 4
        %s435 = smul.addr %s434, 4
        %s436 = scalar_lea.vmem %s3, %s435
        %p437 = pneg %p139
        %p438 = pneg %p136
        %p439 = scmp.lt.s32.totalorder %s33, 1
        %s440 = scalar_select %p439, %s33, 1
        %s441 = smul.addr %s440, 4
        %s442 = smul.addr %s441, 4
        %s443 = scalar_lea.vmem %s4, %s442
        %p444 = pneg %p165
        %p445 = pneg %p162
        %p446 = scmp.lt.s32.totalorder %s33, 1
        %s447 = scalar_select %p446, %s33, 1
        %s448 = scalar_lea.vmem %s5, %s447
        %p449 = pneg %p191
        %p450 = pneg %p188
        %p451 = scmp.lt.s32.totalorder %s33, 1
        %s452 = scalar_select %p451, %s33, 1
        %s453 = smul.addr %s452, 8
        %s454 = smul.addr %s453, 4
        %s455 = scalar_lea.vmem %s6, %s454
        %p456 = pneg %p217
        %p457 = pneg %p214
        %s458 = sand.u32 %s28, 1
        %s459 = scalar_lea.sflag [#allocation6], %s458
        %s460 = sand.u32 %s230, 1
        %s461 = smul.addr %s460, 8
        %s462 = scalar_lea.vmem [#allocation7], %s461
        %p463 = pneg %p243
        %p464 = pneg %p240
        %p465 = pneg %p269
        %p466 = pneg %p266
        %s467 = sand.u32 %s256, 1
        %s468 = scalar_lea.sflag [#allocation4], %s467
        %s469 = sand.u32 %s256, 1
        %s470 = smul.addr %s469, 8
        %s471 = scalar_lea.vmem [#allocation8], %s470
        %p472 = scmp.lt.s32.totalorder %s33, 1
        %s473 = scalar_select %p472, %s33, 1
        %s474 = smul.addr %s473, 4
        %s475 = smul.addr %s474, 4
        %s476 = scalar_lea.vmem %s2, %s475
        %p477 = scmp.lt.s32.totalorder %s33, 1
        %s478 = scalar_select %p477, %s33, 1
        %s479 = smul.addr %s478, 4
        %s480 = smul.addr %s479, 4
        %s481 = scalar_lea.vmem %s3, %s480
        %p482 = scmp.lt.s32.totalorder %s33, 1
        %s483 = scalar_select %p482, %s33, 1
        %s484 = smul.addr %s483, 4
        %s485 = smul.addr %s484, 4
        %s486 = scalar_lea.vmem %s4, %s485
        %p487 = scmp.lt.s32.totalorder %s33, 1
        %s488 = scalar_select %p487, %s33, 1
        %s489 = scalar_lea.vmem %s5, %s488
        %p490 = scmp.lt.s32.totalorder %s33, 1
        %s491 = scalar_select %p490, %s33, 1
        %s492 = smul.addr %s491, 8
        %s493 = smul.addr %s492, 4
        %s494 = scalar_lea.vmem %s6, %s493
        %p496 = scmp.eq.s32.totalorder %s33, 0
        // Predicated region
        $region65: #{tpu_custom_call.1} parent=51 // pred_check
          %p497 = pneg %p496
        $region66: #{tpu_custom_call.1} parent=51 // pred_check_branch
          %499 = sbr.rel (%p497) target = $region68
        $region67: #{tpu_custom_call.1} parent=51 // pred_region
          %v500 = vld [vmem:[%s390] sm:$0xff]
          %vm501 = vcmask 261120
          %502 = vst.msk [vmem:[%s471] sm:$0xff] %vm501, %v500
        $region68: #{tpu_custom_call.1} parent=51 // pred_fallthru
          _
        %v503 = vld [vmem:[%s471] sm:$0xff]
        %v504 = vld [vmem:[%s407] sm:$0xff]
        %v505 = vld [vmem:[%s398] sm:$0x1]
        %v506 = vpack.c.bf16 %v503, %v503
        %v507 = vld [vmem:[%s476] sm:$0xf]
        %v508 = vld [vmem:[%s476 + $0x4] sm:$0xf]
        %v509 = vld [vmem:[%s476 + $0x8] sm:$0xf]
        %v510 = vld [vmem:[%s476 + $0xc] sm:$0xf]
        %v515 = vunpack.c.l.b16 %v507
        %v516 = vunpack.c.l.b16 %v508
        %v517 = vunpack.c.l.b16 %v509
        %v518 = vunpack.c.l.b16 %v510
        %v519 = vpack.c.b16 %v516, %v515
        %v520 = vpack.c.b16 %v518, %v517
        %vm523 = vcmask 261120
        %v525 = vsel %vm523, %v506, 0
        %527 = vmatprep.subr.bf16.mxu0 0
        %528 = vmatpush1.bf16.msra.mxu0 0
        %529 = vmatprep.subr.bf16.mxu0 0
        %530 = vmatpush1.bf16.msra.mxu0 0
        %531 = vmatprep.subr.bf16.mxu0 0
        %532 = vmatpush1.bf16.msra.mxu0 0
        %533 = vmatprep.subr.bf16.mxu0 0
        %534 = vmatpush1.bf16.msra.mxu0 0
        %535 = vmatprep.subr.bf16.mxu0 0
        %536 = vmatpush1.bf16.msra.mxu0 0
        %537 = vmatprep.subr.bf16.mxu0 0
        %538 = vmatpush1.bf16.msra.mxu0 0
        %539 = vmatprep.subr.bf16.mxu0 0
        %540 = vmatpush1.bf16.msra.mxu0 %v520
        %541 = vmatprep.subr.bf16.mxu0 0
        %542 = vmatpush1.bf16.msra.mxu0 %v519
        %543 = vmatprep.subr.bf16.mxu0 0
        %544 = vmatpush2.bf16.msra.mxu0 0
        %545 = vmatprep.subr.bf16.mxu0 0
        %546 = vmatpush2.bf16.msra.mxu0 0
        %547 = vmatprep.subr.bf16.mxu0 0
        %548 = vmatpush2.bf16.msra.mxu0 0
        %549 = vmatprep.subr.bf16.mxu0 0
        %550 = vmatpush2.bf16.msra.mxu0 0
        %551 = vmatprep.subr.bf16.mxu0 0
        %552 = vmatpush2.bf16.msra.mxu0 0
        %553 = vmatprep.subr.bf16.mxu0 0
        %554 = vmatpush2.bf16.msra.mxu0 0
        %555 = vmatprep.subr.bf16.mxu0 0
        %556 = vmatpush2.bf16.msra.mxu0 0
        %557 = vmatprep.subr.bf16.mxu0 0
        %558 = vmatpush2.bf16.msra.mxu0 0
        %559 = vmatprep.mubr.bf16.mxu0 0
        %560 = vmatmul.mubr.bf16.gmra.mxu0 %v525
        %v561 = vpop.f32.mrf.mxu0
        %v562 = vadd.f32 0.0, %v561
        %v563 = vpop.f32.mrf.mxu0
        %v564 = vpop.f32.mrf.mxu0
        %v565 = vpop.f32.mrf.mxu0
        %566 = vdwg.mxu0
        %v567 = vpack.c.bf16 %v562, %v562
        %v568 = vld [vmem:[%s481] sm:$0xf]
        %v569 = vld [vmem:[%s481 + $0x4] sm:$0xf]
        %v570 = vld [vmem:[%s481 + $0x8] sm:$0xf]
        %v571 = vld [vmem:[%s481 + $0xc] sm:$0xf]
        %v573 = vlaneseq
        %v574 = vshrl.u32 %v573, 7
        %v575 = vsub.s32 0, %v574
        %v576 = vrot.slane %v505, %v575
        %579 = vrot.lane.b32.xlu0 %v567, 96
        %v580 = vpop.permute.xlu0 %579
        %vm581 = vcmask 64512
        %v583 = vsel %vm581, %v567, 0
        %v586 = vsel %vm581, %v580, 0
        %588 = vmatprep.subr.bf16.mxu0 0
        %589 = vmatpush1.bf16.xpose.msra.mxu0 0
        %590 = vmatprep.subr.bf16.mxu0 0
        %591 = vmatpush1.bf16.xpose.msra.mxu0 0
        %592 = vmatprep.subr.bf16.mxu0 0
        %593 = vmatpush1.bf16.xpose.msra.mxu0 0
        %594 = vmatprep.subr.bf16.mxu0 0
        %595 = vmatpush1.bf16.xpose.msra.mxu0 0
        %596 = vmatprep.subr.bf16.mxu0 0
        %597 = vmatpush1.bf16.xpose.msra.mxu0 0
        %598 = vmatprep.subr.bf16.mxu0 0
        %599 = vmatpush1.bf16.xpose.msra.mxu0 0
        %600 = vmatprep.subr.bf16.mxu0 0
        %601 = vmatpush1.bf16.xpose.msra.mxu0 0
        %602 = vmatprep.subr.bf16.mxu0 0
        %603 = vmatpush1.bf16.xpose.msra.mxu0 %v586
        %604 = vmatprep.subr.bf16.mxu0 0
        %605 = vmatpush2.bf16.xpose.msra.mxu0 0
        %606 = vmatprep.subr.bf16.mxu0 0
        %607 = vmatpush2.bf16.xpose.msra.mxu0 0
        %608 = vmatprep.subr.bf16.mxu0 0
        %609 = vmatpush2.bf16.xpose.msra.mxu0 0
        %610 = vmatprep.subr.bf16.mxu0 0
        %611 = vmatpush2.bf16.xpose.msra.mxu0 0
        %612 = vmatprep.subr.bf16.mxu0 0
        %613 = vmatpush2.bf16.xpose.msra.mxu0 0
        %614 = vmatprep.subr.bf16.mxu0 0
        %615 = vmatpush2.bf16.xpose.msra.mxu0 0
        %616 = vmatprep.subr.bf16.mxu0 0
        %617 = vmatpush2.bf16.xpose.msra.mxu0 0
        %618 = vmatprep.subr.bf16.mxu0 0
        %619 = vmatpush2.bf16.xpose.msra.mxu0 0
        %620 = vmatprep.mubr.bf16.mxu0 0
        %621 = vmatmul.mubr.bf16.gmra.mxu0 %v583
        %v622 = vpop.f32.mrf.mxu0
        %v623 = vadd.f32 %v576, %v622
        %v624 = vpop.f32.mrf.mxu0
        %v625 = vpop.f32.mrf.mxu0
        %v626 = vpop.f32.mrf.mxu0
        %627 = vdwg.mxu0
        %v628 = vsel %vm581, %v623, -inf
        %629 = vmax.xlane.f32.xlu0 %v628
        %v630 = vpop.xlane.xlu0 %629
        %v631 = vsub.f32 %v623, %v630
        %v632 = vmul.f32 %v631, 1.442695
        %v633 = vpow.pop %v632
        %v634 = vsel %vm581, %v633, 0.0
        %635 = vadd.xlane.f32.xlu0 %v634
        %v636 = vpop.xlane.xlu0 %635
        %v637 = vrcp.pop %v636
        %v638 = vmul.f32 %v633, %v637
        %v639 = vpack.c.bf16 %v638, %v638
        %640 = vrot.lane.b32.xlu0 %v567, 64
        %v641 = vpop.permute.xlu0 %640
        %v643 = vsel %vm581, %v639, 0
        %vm645 = vcmask 1043456
        %v647 = vsel %vm645, %v641, 0
        %649 = vmatprep.subr.bf16.mxu0 0
        %650 = vmatpush1.bf16.msra.mxu0 0
        %651 = vmatprep.subr.bf16.mxu0 0
        %652 = vmatpush1.bf16.msra.mxu0 0
        %653 = vmatprep.subr.bf16.mxu0 0
        %654 = vmatpush1.bf16.msra.mxu0 0
        %655 = vmatprep.subr.bf16.mxu0 0
        %656 = vmatpush1.bf16.msra.mxu0 0
        %657 = vmatprep.subr.bf16.mxu0 0
        %658 = vmatpush1.bf16.msra.mxu0 0
        %659 = vmatprep.subr.bf16.mxu0 0
        %660 = vmatpush1.bf16.msra.mxu0 0
        %661 = vmatprep.subr.bf16.mxu0 0
        %662 = vmatpush1.bf16.msra.mxu0 0
        %663 = vmatprep.subr.bf16.mxu0 0
        %664 = vmatpush1.bf16.msra.mxu0 %v647
        %665 = vmatprep.subr.bf16.mxu0 0
        %666 = vmatpush2.bf16.msra.mxu0 0
        %667 = vmatprep.subr.bf16.mxu0 0
        %668 = vmatpush2.bf16.msra.mxu0 0
        %669 = vmatprep.subr.bf16.mxu0 0
        %670 = vmatpush2.bf16.msra.mxu0 0
        %671 = vmatprep.subr.bf16.mxu0 0
        %672 = vmatpush2.bf16.msra.mxu0 0
        %673 = vmatprep.subr.bf16.mxu0 0
        %674 = vmatpush2.bf16.msra.mxu0 0
        %675 = vmatprep.subr.bf16.mxu0 0
        %676 = vmatpush2.bf16.msra.mxu0 0
        %677 = vmatprep.subr.bf16.mxu0 0
        %678 = vmatpush2.bf16.msra.mxu0 0
        %679 = vmatprep.subr.bf16.mxu0 0
        %680 = vmatpush2.bf16.msra.mxu0 0
        %681 = vmatprep.mubr.bf16.mxu0 0
        %682 = vmatmul.mubr.bf16.gmra.mxu0 %v643
        %v683 = vpop.f32.mrf.mxu0
        %v684 = vadd.f32 0.0, %v683
        %v685 = vpop.f32.mrf.mxu0
        %v686 = vpop.f32.mrf.mxu0
        %v687 = vpop.f32.mrf.mxu0
        %688 = vdwg.mxu0
        %v689 = vpack.c.bf16 %v684, %v684
        %690 = vrot.lane.b32.xlu0 %v567, 120
        %v691 = vpop.permute.xlu0 %690
        %692 = vrot.lane.b32.xlu0 %v567, 88
        %v693 = vpop.permute.xlu0 %692
        %v695 = vsel %vm581, %v691, 0
        %v698 = vsel %vm581, %v693, 0
        %700 = vmatprep.subr.bf16.mxu0 0
        %701 = vmatpush1.bf16.xpose.msra.mxu0 0
        %702 = vmatprep.subr.bf16.mxu0 0
        %703 = vmatpush1.bf16.xpose.msra.mxu0 0
        %704 = vmatprep.subr.bf16.mxu0 0
        %705 = vmatpush1.bf16.xpose.msra.mxu0 0
        %706 = vmatprep.subr.bf16.mxu0 0
        %707 = vmatpush1.bf16.xpose.msra.mxu0 0
        %708 = vmatprep.subr.bf16.mxu0 0
        %709 = vmatpush1.bf16.xpose.msra.mxu0 0
        %710 = vmatprep.subr.bf16.mxu0 0
        %711 = vmatpush1.bf16.xpose.msra.mxu0 0
        %712 = vmatprep.subr.bf16.mxu0 0
        %713 = vmatpush1.bf16.xpose.msra.mxu0 0
        %714 = vmatprep.subr.bf16.mxu0 0
        %715 = vmatpush1.bf16.xpose.msra.mxu0 %v698
        %716 = vmatprep.subr.bf16.mxu0 0
        %717 = vmatpush2.bf16.xpose.msra.mxu0 0
        %718 = vmatprep.subr.bf16.mxu0 0
        %719 = vmatpush2.bf16.xpose.msra.mxu0 0
        %720 = vmatprep.subr.bf16.mxu0 0
        %721 = vmatpush2.bf16.xpose.msra.mxu0 0
        %722 = vmatprep.subr.bf16.mxu0 0
        %723 = vmatpush2.bf16.xpose.msra.mxu0 0
        %724 = vmatprep.subr.bf16.mxu0 0
        %725 = vmatpush2.bf16.xpose.msra.mxu0 0
        %726 = vmatprep.subr.bf16.mxu0 0
        %727 = vmatpush2.bf16.xpose.msra.mxu0 0
        %728 = vmatprep.subr.bf16.mxu0 0
        %729 = vmatpush2.bf16.xpose.msra.mxu0 0
        %730 = vmatprep.subr.bf16.mxu0 0
        %731 = vmatpush2.bf16.xpose.msra.mxu0 0
        %732 = vmatprep.mubr.bf16.mxu0 0
        %733 = vmatmul.mubr.bf16.gmra.mxu0 %v695
        %v734 = vpop.f32.mrf.mxu0
        %v735 = vadd.f32 %v576, %v734
        %v736 = vpop.f32.mrf.mxu0
        %v737 = vpop.f32.mrf.mxu0
        %v738 = vpop.f32.mrf.mxu0
        %739 = vdwg.mxu0
        %v740 = vsel %vm581, %v735, -inf
        %741 = vmax.xlane.f32.xlu0 %v740
        %v742 = vpop.xlane.xlu0 %741
        %v743 = vsub.f32 %v735, %v742
        %v744 = vmul.f32 %v743, 1.442695
        %v745 = vpow.pop %v744
        %v746 = vsel %vm581, %v745, 0.0
        %747 = vadd.xlane.f32.xlu0 %v746
        %v748 = vpop.xlane.xlu0 %747
        %v749 = vrcp.pop %v748
        %v750 = vmul.f32 %v745, %v749
        %v751 = vpack.c.bf16 %v750, %v750
        %752 = vrot.lane.b32.xlu0 %v567, 56
        %v753 = vpop.permute.xlu0 %752
        %v755 = vsel %vm581, %v751, 0
        %v758 = vsel %vm645, %v753, 0
        %760 = vmatprep.subr.bf16.mxu0 0
        %761 = vmatpush1.bf16.msra.mxu0 0
        %762 = vmatprep.subr.bf16.mxu0 0
        %763 = vmatpush1.bf16.msra.mxu0 0
        %764 = vmatprep.subr.bf16.mxu0 0
        %765 = vmatpush1.bf16.msra.mxu0 0
        %766 = vmatprep.subr.bf16.mxu0 0
        %767 = vmatpush1.bf16.msra.mxu0 0
        %768 = vmatprep.subr.bf16.mxu0 0
        %769 = vmatpush1.bf16.msra.mxu0 0
        %770 = vmatprep.subr.bf16.mxu0 0
        %771 = vmatpush1.bf16.msra.mxu0 0
        %772 = vmatprep.subr.bf16.mxu0 0
        %773 = vmatpush1.bf16.msra.mxu0 0
        %774 = vmatprep.subr.bf16.mxu0 0
        %775 = vmatpush1.bf16.msra.mxu0 %v758
        %776 = vmatprep.subr.bf16.mxu0 0
        %777 = vmatpush2.bf16.msra.mxu0 0
        %778 = vmatprep.subr.bf16.mxu0 0
        %779 = vmatpush2.bf16.msra.mxu0 0
        %780 = vmatprep.subr.bf16.mxu0 0
        %781 = vmatpush2.bf16.msra.mxu0 0
        %782 = vmatprep.subr.bf16.mxu0 0
        %783 = vmatpush2.bf16.msra.mxu0 0
        %784 = vmatprep.subr.bf16.mxu0 0
        %785 = vmatpush2.bf16.msra.mxu0 0
        %786 = vmatprep.subr.bf16.mxu0 0
        %787 = vmatpush2.bf16.msra.mxu0 0
        %788 = vmatprep.subr.bf16.mxu0 0
        %789 = vmatpush2.bf16.msra.mxu0 0
        %790 = vmatprep.subr.bf16.mxu0 0
        %791 = vmatpush2.bf16.msra.mxu0 0
        %792 = vmatprep.mubr.bf16.mxu0 0
        %793 = vmatmul.mubr.bf16.gmra.mxu0 %v755
        %v794 = vpop.f32.mrf.mxu0
        %v795 = vadd.f32 0.0, %v794
        %v796 = vpop.f32.mrf.mxu0
        %v797 = vpop.f32.mrf.mxu0
        %v798 = vpop.f32.mrf.mxu0
        %799 = vdwg.mxu0
        %v800 = vpack.c.bf16 %v795, %v795
        %v802 = vsel %vm581, %v800, 0
        %v805 = vsel %vm645, %v569, 0
        %807 = vmatprep.subr.bf16.mxu0 0
        %808 = vmatpush1.bf16.msra.mxu0 0
        %809 = vmatprep.subr.bf16.mxu0 0
        %810 = vmatpush1.bf16.msra.mxu0 0
        %811 = vmatprep.subr.bf16.mxu0 0
        %812 = vmatpush1.bf16.msra.mxu0 0
        %813 = vmatprep.subr.bf16.mxu0 0
        %814 = vmatpush1.bf16.msra.mxu0 0
        %815 = vmatprep.subr.bf16.mxu0 0
        %816 = vmatpush1.bf16.msra.mxu0 0
        %817 = vmatprep.subr.bf16.mxu0 0
        %818 = vmatpush1.bf16.msra.mxu0 0
        %819 = vmatprep.subr.bf16.mxu0 0
        %820 = vmatpush1.bf16.msra.mxu0 0
        %821 = vmatprep.subr.bf16.mxu0 0
        %822 = vmatpush1.bf16.msra.mxu0 %v805
        %823 = vmatprep.subr.bf16.mxu0 0
        %824 = vmatpush2.bf16.msra.mxu0 0
        %825 = vmatprep.subr.bf16.mxu0 0
        %826 = vmatpush2.bf16.msra.mxu0 0
        %827 = vmatprep.subr.bf16.mxu0 0
        %828 = vmatpush2.bf16.msra.mxu0 0
        %829 = vmatprep.subr.bf16.mxu0 0
        %830 = vmatpush2.bf16.msra.mxu0 0
        %831 = vmatprep.subr.bf16.mxu0 0
        %832 = vmatpush2.bf16.msra.mxu0 0
        %833 = vmatprep.subr.bf16.mxu0 0
        %834 = vmatpush2.bf16.msra.mxu0 0
        %835 = vmatprep.subr.bf16.mxu0 0
        %836 = vmatpush2.bf16.msra.mxu0 0
        %837 = vmatprep.subr.bf16.mxu0 0
        %838 = vmatpush2.bf16.msra.mxu0 0
        %839 = vmatprep.mubr.bf16.mxu0 0
        %840 = vmatmul.mubr.bf16.gmra.mxu0 %v802
        %v841 = vpop.f32.mrf.mxu0
        %v842 = vadd.f32 0.0, %v841
        %v843 = vpop.f32.mrf.mxu0
        %v844 = vpop.f32.mrf.mxu0
        %v845 = vpop.f32.mrf.mxu0
        %846 = vdwg.mxu0
        %v848 = vsel %vm581, %v689, 0
        %v851 = vsel %vm645, %v568, 0
        %853 = vmatprep.subr.bf16.mxu0 0
        %854 = vmatpush1.bf16.msra.mxu0 0
        %855 = vmatprep.subr.bf16.mxu0 0
        %856 = vmatpush1.bf16.msra.mxu0 0
        %857 = vmatprep.subr.bf16.mxu0 0
        %858 = vmatpush1.bf16.msra.mxu0 0
        %859 = vmatprep.subr.bf16.mxu0 0
        %860 = vmatpush1.bf16.msra.mxu0 0
        %861 = vmatprep.subr.bf16.mxu0 0
        %862 = vmatpush1.bf16.msra.mxu0 0
        %863 = vmatprep.subr.bf16.mxu0 0
        %864 = vmatpush1.bf16.msra.mxu0 0
        %865 = vmatprep.subr.bf16.mxu0 0
        %866 = vmatpush1.bf16.msra.mxu0 0
        %867 = vmatprep.subr.bf16.mxu0 0
        %868 = vmatpush1.bf16.msra.mxu0 %v851
        %869 = vmatprep.subr.bf16.mxu0 0
        %870 = vmatpush2.bf16.msra.mxu0 0
        %871 = vmatprep.subr.bf16.mxu0 0
        %872 = vmatpush2.bf16.msra.mxu0 0
        %873 = vmatprep.subr.bf16.mxu0 0
        %874 = vmatpush2.bf16.msra.mxu0 0
        %875 = vmatprep.subr.bf16.mxu0 0
        %876 = vmatpush2.bf16.msra.mxu0 0
        %877 = vmatprep.subr.bf16.mxu0 0
        %878 = vmatpush2.bf16.msra.mxu0 0
        %879 = vmatprep.subr.bf16.mxu0 0
        %880 = vmatpush2.bf16.msra.mxu0 0
        %881 = vmatprep.subr.bf16.mxu0 0
        %882 = vmatpush2.bf16.msra.mxu0 0
        %883 = vmatprep.subr.bf16.mxu0 0
        %884 = vmatpush2.bf16.msra.mxu0 0
        %885 = vmatprep.mubr.bf16.mxu0 0
        %886 = vmatmul.mubr.bf16.gmra.mxu0 %v848
        %v887 = vpop.f32.mrf.mxu0
        %v888 = vadd.f32 %v842, %v887
        %v889 = vpop.f32.mrf.mxu0
        %v890 = vpop.f32.mrf.mxu0
        %v891 = vpop.f32.mrf.mxu0
        %892 = vdwg.mxu0
        %893 = vrot.lane.b32.xlu0 %v567, 112
        %v894 = vpop.permute.xlu0 %893
        %895 = vrot.lane.b32.xlu0 %v567, 80
        %v896 = vpop.permute.xlu0 %895
        %v898 = vsel %vm581, %v894, 0
        %v901 = vsel %vm581, %v896, 0
        %903 = vmatprep.subr.bf16.mxu0 0
        %904 = vmatpush1.bf16.xpose.msra.mxu0 0
        %905 = vmatprep.subr.bf16.mxu0 0
        %906 = vmatpush1.bf16.xpose.msra.mxu0 0
        %907 = vmatprep.subr.bf16.mxu0 0
        %908 = vmatpush1.bf16.xpose.msra.mxu0 0
        %909 = vmatprep.subr.bf16.mxu0 0
        %910 = vmatpush1.bf16.xpose.msra.mxu0 0
        %911 = vmatprep.subr.bf16.mxu0 0
        %912 = vmatpush1.bf16.xpose.msra.mxu0 0
        %913 = vmatprep.subr.bf16.mxu0 0
        %914 = vmatpush1.bf16.xpose.msra.mxu0 0
        %915 = vmatprep.subr.bf16.mxu0 0
        %916 = vmatpush1.bf16.xpose.msra.mxu0 0
        %917 = vmatprep.subr.bf16.mxu0 0
        %918 = vmatpush1.bf16.xpose.msra.mxu0 %v901
        %919 = vmatprep.subr.bf16.mxu0 0
        %920 = vmatpush2.bf16.xpose.msra.mxu0 0
        %921 = vmatprep.subr.bf16.mxu0 0
        %922 = vmatpush2.bf16.xpose.msra.mxu0 0
        %923 = vmatprep.subr.bf16.mxu0 0
        %924 = vmatpush2.bf16.xpose.msra.mxu0 0
        %925 = vmatprep.subr.bf16.mxu0 0
        %926 = vmatpush2.bf16.xpose.msra.mxu0 0
        %927 = vmatprep.subr.bf16.mxu0 0
        %928 = vmatpush2.bf16.xpose.msra.mxu0 0
        %929 = vmatprep.subr.bf16.mxu0 0
        %930 = vmatpush2.bf16.xpose.msra.mxu0 0
        %931 = vmatprep.subr.bf16.mxu0 0
        %932 = vmatpush2.bf16.xpose.msra.mxu0 0
        %933 = vmatprep.subr.bf16.mxu0 0
        %934 = vmatpush2.bf16.xpose.msra.mxu0 0
        %935 = vmatprep.mubr.bf16.mxu0 0
        %936 = vmatmul.mubr.bf16.gmra.mxu0 %v898
        %v937 = vpop.f32.mrf.mxu0
        %v938 = vadd.f32 %v576, %v937
        %v939 = vpop.f32.mrf.mxu0
        %v940 = vpop.f32.mrf.mxu0
        %v941 = vpop.f32.mrf.mxu0
        %942 = vdwg.mxu0
        %v943 = vsel %vm581, %v938, -inf
        %944 = vmax.xlane.f32.xlu0 %v943
        %v945 = vpop.xlane.xlu0 %944
        %v946 = vsub.f32 %v938, %v945
        %v947 = vmul.f32 %v946, 1.442695
        %v948 = vpow.pop %v947
        %v949 = vsel %vm581, %v948, 0.0
        %950 = vadd.xlane.f32.xlu0 %v949
        %v951 = vpop.xlane.xlu0 %950
        %v952 = vrcp.pop %v951
        %v953 = vmul.f32 %v948, %v952
        %v954 = vpack.c.bf16 %v953, %v953
        %955 = vrot.lane.b32.xlu0 %v567, 48
        %v956 = vpop.permute.xlu0 %955
        %v958 = vsel %vm581, %v954, 0
        %v961 = vsel %vm645, %v956, 0
        %963 = vmatprep.subr.bf16.mxu0 0
        %964 = vmatpush1.bf16.msra.mxu0 0
        %965 = vmatprep.subr.bf16.mxu0 0
        %966 = vmatpush1.bf16.msra.mxu0 0
        %967 = vmatprep.subr.bf16.mxu0 0
        %968 = vmatpush1.bf16.msra.mxu0 0
        %969 = vmatprep.subr.bf16.mxu0 0
        %970 = vmatpush1.bf16.msra.mxu0 0
        %971 = vmatprep.subr.bf16.mxu0 0
        %972 = vmatpush1.bf16.msra.mxu0 0
        %973 = vmatprep.subr.bf16.mxu0 0
        %974 = vmatpush1.bf16.msra.mxu0 0
        %975 = vmatprep.subr.bf16.mxu0 0
        %976 = vmatpush1.bf16.msra.mxu0 0
        %977 = vmatprep.subr.bf16.mxu0 0
        %978 = vmatpush1.bf16.msra.mxu0 %v961
        %979 = vmatprep.subr.bf16.mxu0 0
        %980 = vmatpush2.bf16.msra.mxu0 0
        %981 = vmatprep.subr.bf16.mxu0 0
        %982 = vmatpush2.bf16.msra.mxu0 0
        %983 = vmatprep.subr.bf16.mxu0 0
        %984 = vmatpush2.bf16.msra.mxu0 0
        %985 = vmatprep.subr.bf16.mxu0 0
        %986 = vmatpush2.bf16.msra.mxu0 0
        %987 = vmatprep.subr.bf16.mxu0 0
        %988 = vmatpush2.bf16.msra.mxu0 0
        %989 = vmatprep.subr.bf16.mxu0 0
        %990 = vmatpush2.bf16.msra.mxu0 0
        %991 = vmatprep.subr.bf16.mxu0 0
        %992 = vmatpush2.bf16.msra.mxu0 0
        %993 = vmatprep.subr.bf16.mxu0 0
        %994 = vmatpush2.bf16.msra.mxu0 0
        %995 = vmatprep.mubr.bf16.mxu0 0
        %996 = vmatmul.mubr.bf16.gmra.mxu0 %v958
        %v997 = vpop.f32.mrf.mxu0
        %v998 = vadd.f32 0.0, %v997
        %v999 = vpop.f32.mrf.mxu0
        %v1000 = vpop.f32.mrf.mxu0
        %v1001 = vpop.f32.mrf.mxu0
        %1002 = vdwg.mxu0
        %v1003 = vpack.c.bf16 %v998, %v998
        %v1005 = vsel %vm581, %v1003, 0
        %v1008 = vsel %vm645, %v570, 0
        %1010 = vmatprep.subr.bf16.mxu0 0
        %1011 = vmatpush1.bf16.msra.mxu0 0
        %1012 = vmatprep.subr.bf16.mxu0 0
        %1013 = vmatpush1.bf16.msra.mxu0 0
        %1014 = vmatprep.subr.bf16.mxu0 0
        %1015 = vmatpush1.bf16.msra.mxu0 0
        %1016 = vmatprep.subr.bf16.mxu0 0
        %1017 = vmatpush1.bf16.msra.mxu0 0
        %1018 = vmatprep.subr.bf16.mxu0 0
        %1019 = vmatpush1.bf16.msra.mxu0 0
        %1020 = vmatprep.subr.bf16.mxu0 0
        %1021 = vmatpush1.bf16.msra.mxu0 0
        %1022 = vmatprep.subr.bf16.mxu0 0
        %1023 = vmatpush1.bf16.msra.mxu0 0
        %1024 = vmatprep.subr.bf16.mxu0 0
        %1025 = vmatpush1.bf16.msra.mxu0 %v1008
        %1026 = vmatprep.subr.bf16.mxu0 0
        %1027 = vmatpush2.bf16.msra.mxu0 0
        %1028 = vmatprep.subr.bf16.mxu0 0
        %1029 = vmatpush2.bf16.msra.mxu0 0
        %1030 = vmatprep.subr.bf16.mxu0 0
        %1031 = vmatpush2.bf16.msra.mxu0 0
        %1032 = vmatprep.subr.bf16.mxu0 0
        %1033 = vmatpush2.bf16.msra.mxu0 0
        %1034 = vmatprep.subr.bf16.mxu0 0
        %1035 = vmatpush2.bf16.msra.mxu0 0
        %1036 = vmatprep.subr.bf16.mxu0 0
        %1037 = vmatpush2.bf16.msra.mxu0 0
        %1038 = vmatprep.subr.bf16.mxu0 0
        %1039 = vmatpush2.bf16.msra.mxu0 0
        %1040 = vmatprep.subr.bf16.mxu0 0
        %1041 = vmatpush2.bf16.msra.mxu0 0
        %1042 = vmatprep.mubr.bf16.mxu0 0
        %1043 = vmatmul.mubr.bf16.gmra.mxu0 %v1005
        %v1044 = vpop.f32.mrf.mxu0
        %v1045 = vadd.f32 0.0, %v1044
        %v1046 = vpop.f32.mrf.mxu0
        %v1047 = vpop.f32.mrf.mxu0
        %v1048 = vpop.f32.mrf.mxu0
        %1049 = vdwg.mxu0
        %v1050 = vadd.f32 %v888, %v1045
        %1051 = vrot.lane.b32.xlu0 %v567, 104
        %v1052 = vpop.permute.xlu0 %1051
        %1053 = vrot.lane.b32.xlu0 %v567, 72
        %v1054 = vpop.permute.xlu0 %1053
        %v1056 = vsel %vm581, %v1052, 0
        %v1059 = vsel %vm581, %v1054, 0
        %1061 = vmatprep.subr.bf16.mxu0 0
        %1062 = vmatpush1.bf16.xpose.msra.mxu0 0
        %1063 = vmatprep.subr.bf16.mxu0 0
        %1064 = vmatpush1.bf16.xpose.msra.mxu0 0
        %1065 = vmatprep.subr.bf16.mxu0 0
        %1066 = vmatpush1.bf16.xpose.msra.mxu0 0
        %1067 = vmatprep.subr.bf16.mxu0 0
        %1068 = vmatpush1.bf16.xpose.msra.mxu0 0
        %1069 = vmatprep.subr.bf16.mxu0 0
        %1070 = vmatpush1.bf16.xpose.msra.mxu0 0
        %1071 = vmatprep.subr.bf16.mxu0 0
        %1072 = vmatpush1.bf16.xpose.msra.mxu0 0
        %1073 = vmatprep.subr.bf16.mxu0 0
        %1074 = vmatpush1.bf16.xpose.msra.mxu0 0
        %1075 = vmatprep.subr.bf16.mxu0 0
        %1076 = vmatpush1.bf16.xpose.msra.mxu0 %v1059
        %1077 = vmatprep.subr.bf16.mxu0 0
        %1078 = vmatpush2.bf16.xpose.msra.mxu0 0
        %1079 = vmatprep.subr.bf16.mxu0 0
        %1080 = vmatpush2.bf16.xpose.msra.mxu0 0
        %1081 = vmatprep.subr.bf16.mxu0 0
        %1082 = vmatpush2.bf16.xpose.msra.mxu0 0
        %1083 = vmatprep.subr.bf16.mxu0 0
        %1084 = vmatpush2.bf16.xpose.msra.mxu0 0
        %1085 = vmatprep.subr.bf16.mxu0 0
        %1086 = vmatpush2.bf16.xpose.msra.mxu0 0
        %1087 = vmatprep.subr.bf16.mxu0 0
        %1088 = vmatpush2.bf16.xpose.msra.mxu0 0
        %1089 = vmatprep.subr.bf16.mxu0 0
        %1090 = vmatpush2.bf16.xpose.msra.mxu0 0
        %1091 = vmatprep.subr.bf16.mxu0 0
        %1092 = vmatpush2.bf16.xpose.msra.mxu0 0
        %1093 = vmatprep.mubr.bf16.mxu0 0
        %1094 = vmatmul.mubr.bf16.gmra.mxu0 %v1056
        %v1095 = vpop.f32.mrf.mxu0
        %v1096 = vadd.f32 %v576, %v1095
        %v1097 = vpop.f32.mrf.mxu0
        %v1098 = vpop.f32.mrf.mxu0
        %v1099 = vpop.f32.mrf.mxu0
        %1100 = vdwg.mxu0
        %v1101 = vsel %vm581, %v1096, -inf
        %1102 = vmax.xlane.f32.xlu0 %v1101
        %v1103 = vpop.xlane.xlu0 %1102
        %v1104 = vsub.f32 %v1096, %v1103
        %v1105 = vmul.f32 %v1104, 1.442695
        %v1106 = vpow.pop %v1105
        %v1107 = vsel %vm581, %v1106, 0.0
        %1108 = vadd.xlane.f32.xlu0 %v1107
        %v1109 = vpop.xlane.xlu0 %1108
        %v1110 = vrcp.pop %v1109
        %v1111 = vmul.f32 %v1106, %v1110
        %v1112 = vpack.c.bf16 %v1111, %v1111
        %1113 = vrot.lane.b32.xlu0 %v567, 40
        %v1114 = vpop.permute.xlu0 %1113
        %v1116 = vsel %vm581, %v1112, 0
        %v1119 = vsel %vm645, %v1114, 0
        %1121 = vmatprep.subr.bf16.mxu0 0
        %1122 = vmatpush1.bf16.msra.mxu0 0
        %1123 = vmatprep.subr.bf16.mxu0 0
        %1124 = vmatpush1.bf16.msra.mxu0 0
        %1125 = vmatprep.subr.bf16.mxu0 0
        %1126 = vmatpush1.bf16.msra.mxu0 0
        %1127 = vmatprep.subr.bf16.mxu0 0
        %1128 = vmatpush1.bf16.msra.mxu0 0
        %1129 = vmatprep.subr.bf16.mxu0 0
        %1130 = vmatpush1.bf16.msra.mxu0 0
        %1131 = vmatprep.subr.bf16.mxu0 0
        %1132 = vmatpush1.bf16.msra.mxu0 0
        %1133 = vmatprep.subr.bf16.mxu0 0
        %1134 = vmatpush1.bf16.msra.mxu0 0
        %1135 = vmatprep.subr.bf16.mxu0 0
        %1136 = vmatpush1.bf16.msra.mxu0 %v1119
        %1137 = vmatprep.subr.bf16.mxu0 0
        %1138 = vmatpush2.bf16.msra.mxu0 0
        %1139 = vmatprep.subr.bf16.mxu0 0
        %1140 = vmatpush2.bf16.msra.mxu0 0
        %1141 = vmatprep.subr.bf16.mxu0 0
        %1142 = vmatpush2.bf16.msra.mxu0 0
        %1143 = vmatprep.subr.bf16.mxu0 0
        %1144 = vmatpush2.bf16.msra.mxu0 0
        %1145 = vmatprep.subr.bf16.mxu0 0
        %1146 = vmatpush2.bf16.msra.mxu0 0
        %1147 = vmatprep.subr.bf16.mxu0 0
        %1148 = vmatpush2.bf16.msra.mxu0 0
        %1149 = vmatprep.subr.bf16.mxu0 0
        %1150 = vmatpush2.bf16.msra.mxu0 0
        %1151 = vmatprep.subr.bf16.mxu0 0
        %1152 = vmatpush2.bf16.msra.mxu0 0
        %1153 = vmatprep.mubr.bf16.mxu0 0
        %1154 = vmatmul.mubr.bf16.gmra.mxu0 %v1116
        %v1155 = vpop.f32.mrf.mxu0
        %v1156 = vadd.f32 0.0, %v1155
        %v1157 = vpop.f32.mrf.mxu0
        %v1158 = vpop.f32.mrf.mxu0
        %v1159 = vpop.f32.mrf.mxu0
        %1160 = vdwg.mxu0
        %v1161 = vpack.c.bf16 %v1156, %v1156
        %v1163 = vsel %vm581, %v1161, 0
        %v1166 = vsel %vm645, %v571, 0
        %1168 = vmatprep.subr.bf16.mxu0 0
        %1169 = vmatpush1.bf16.msra.mxu0 0
        %1170 = vmatprep.subr.bf16.mxu0 0
        %1171 = vmatpush1.bf16.msra.mxu0 0
        %1172 = vmatprep.subr.bf16.mxu0 0
        %1173 = vmatpush1.bf16.msra.mxu0 0
        %1174 = vmatprep.subr.bf16.mxu0 0
        %1175 = vmatpush1.bf16.msra.mxu0 0
        %1176 = vmatprep.subr.bf16.mxu0 0
        %1177 = vmatpush1.bf16.msra.mxu0 0
        %1178 = vmatprep.subr.bf16.mxu0 0
        %1179 = vmatpush1.bf16.msra.mxu0 0
        %1180 = vmatprep.subr.bf16.mxu0 0
        %1181 = vmatpush1.bf16.msra.mxu0 0
        %1182 = vmatprep.subr.bf16.mxu0 0
        %1183 = vmatpush1.bf16.msra.mxu0 %v1166
        %1184 = vmatprep.subr.bf16.mxu0 0
        %1185 = vmatpush2.bf16.msra.mxu0 0
        %1186 = vmatprep.subr.bf16.mxu0 0
        %1187 = vmatpush2.bf16.msra.mxu0 0
        %1188 = vmatprep.subr.bf16.mxu0 0
        %1189 = vmatpush2.bf16.msra.mxu0 0
        %1190 = vmatprep.subr.bf16.mxu0 0
        %1191 = vmatpush2.bf16.msra.mxu0 0
        %1192 = vmatprep.subr.bf16.mxu0 0
        %1193 = vmatpush2.bf16.msra.mxu0 0
        %1194 = vmatprep.subr.bf16.mxu0 0
        %1195 = vmatpush2.bf16.msra.mxu0 0
        %1196 = vmatprep.subr.bf16.mxu0 0
        %1197 = vmatpush2.bf16.msra.mxu0 0
        %1198 = vmatprep.subr.bf16.mxu0 0
        %1199 = vmatpush2.bf16.msra.mxu0 0
        %1200 = vmatprep.mubr.bf16.mxu0 0
        %1201 = vmatmul.mubr.bf16.gmra.mxu0 %v1163
        %v1202 = vpop.f32.mrf.mxu0
        %v1203 = vadd.f32 0.0, %v1202
        %v1204 = vpop.f32.mrf.mxu0
        %v1205 = vpop.f32.mrf.mxu0
        %v1206 = vpop.f32.mrf.mxu0
        %1207 = vdwg.mxu0
        %v1208 = vadd.f32 %v1050, %v1203
        %v1209 = vlaneseq
        %v1210 = vshrl.u32 %v1209, 7
        %v1211 = vsub.s32 0, %v1210
        %v1212 = vrot.slane %v504, %v1211
        %v1213 = vadd.f32 %v1208, %v1212
        %v1214 = vadd.f32 %v503, %v1213
        %v1215 = vsel %vm523, %v1214, 0.0
        %1216 = vadd.xlane.f32.xlu0 %v1215
        %v1217 = vpop.xlane.xlu0 %1216
        %v1218 = vrcp.pop 32.0
        %v1219 = vmul.f32 %v1217, %v1218
        %v1220 = vsub.f32 %v1214, %v1219
        %v1221 = vmul.f32 %v1220, %v1220
        %v1222 = vsel %vm523, %v1221, 0.0
        %1223 = vadd.xlane.f32.xlu0 %v1222
        %v1224 = vpop.xlane.xlu0 %1223
        %v1225 = vmul.f32 %v1224, %v1218
        %v1226 = vadd.f32 %v1225, 1e-05
        %v1227 = vrsqrt.pop %v1226
        %v1228 = vmul.f32 %v1220, %v1227
        %v1229 = vlaneseq
        %v1230 = vshrl.u32 %v1229, 7
        %v1231 = vsub.s32 2, %v1230
        %v1232 = vrot.slane %v504, %v1231
        %v1233 = vmul.f32 %v1228, %v1232
        %v1234 = vlaneseq
        %v1235 = vshrl.u32 %v1234, 7
        %v1236 = vsub.s32 3, %v1235
        %v1237 = vrot.slane %v504, %v1236
        %v1238 = vadd.f32 %v1233, %v1237
        %v1239 = vpack.c.bf16 %v1238, %v1238
        %v1240 = vld [vmem:[%s486] sm:$0xf]
        %v1241 = vld [vmem:[%s486 + $0x4] sm:$0xf]
        %v1242 = vld [vmem:[%s486 + $0x8] sm:$0xf]
        %v1243 = vld [vmem:[%s486 + $0xc] sm:$0xf]
        %v1244 = vld [vmem:[%s489] sm:$0x1]
        %v1246 = vlaneseq
        %v1247 = vshrl.u32 %v1246, 7
        %v1248 = vsub.s32 0, %v1247
        %v1249 = vrot.slane %v1244, %v1248
        %v1255 = vunpack.c.l.b16 %v1240
        %v1256 = vunpack.c.l.b16 %v1241
        %v1257 = vunpack.c.l.b16 %v1242
        %v1258 = vunpack.c.l.b16 %v1243
        %v1259 = vpack.c.b16 %v1256, %v1255
        %v1260 = vpack.c.b16 %v1258, %v1257
        %v1264 = vsel %vm523, %v1239, 0
        %1266 = vmatprep.subr.bf16.mxu0 0
        %1267 = vmatpush1.bf16.msra.mxu0 0
        %1268 = vmatprep.subr.bf16.mxu0 0
        %1269 = vmatpush1.bf16.msra.mxu0 0
        %1270 = vmatprep.subr.bf16.mxu0 0
        %1271 = vmatpush1.bf16.msra.mxu0 0
        %1272 = vmatprep.subr.bf16.mxu0 0
        %1273 = vmatpush1.bf16.msra.mxu0 0
        %1274 = vmatprep.subr.bf16.mxu0 0
        %1275 = vmatpush1.bf16.msra.mxu0 0
        %1276 = vmatprep.subr.bf16.mxu0 0
        %1277 = vmatpush1.bf16.msra.mxu0 0
        %1278 = vmatprep.subr.bf16.mxu0 0
        %1279 = vmatpush1.bf16.msra.mxu0 %v1260
        %1280 = vmatprep.subr.bf16.mxu0 0
        %1281 = vmatpush1.bf16.msra.mxu0 %v1259
        %1282 = vmatprep.subr.bf16.mxu0 0
        %1283 = vmatpush2.bf16.msra.mxu0 0
        %1284 = vmatprep.subr.bf16.mxu0 0
        %1285 = vmatpush2.bf16.msra.mxu0 0
        %1286 = vmatprep.subr.bf16.mxu0 0
        %1287 = vmatpush2.bf16.msra.mxu0 0
        %1288 = vmatprep.subr.bf16.mxu0 0
        %1289 = vmatpush2.bf16.msra.mxu0 0
        %1290 = vmatprep.subr.bf16.mxu0 0
        %1291 = vmatpush2.bf16.msra.mxu0 0
        %1292 = vmatprep.subr.bf16.mxu0 0
        %1293 = vmatpush2.bf16.msra.mxu0 0
        %1294 = vmatprep.subr.bf16.mxu0 0
        %1295 = vmatpush2.bf16.msra.mxu0 0
        %1296 = vmatprep.subr.bf16.mxu0 0
        %1297 = vmatpush2.bf16.msra.mxu0 0
        %1298 = vmatprep.mubr.bf16.mxu0 0
        %1299 = vmatmul.mubr.bf16.gmra.mxu0 %v1264
        %v1300 = vpop.f32.mrf.mxu0
        %v1301 = vadd.f32 %v1249, %v1300
        %v1302 = vpop.f32.mrf.mxu0
        %v1303 = vpop.f32.mrf.mxu0
        %v1304 = vpop.f32.mrf.mxu0
        %1305 = vdwg.mxu0
        %v1306 = vmax.f32 %v1301, 0.0
        %v1307 = vpack.c.bf16 %v1306, %v1306
        %v1308 = vld [vmem:[%s494] sm:$0xf]
        %v1309 = vld [vmem:[%s494 + $0x4] sm:$0xf]
        %v1310 = vld [vmem:[%s494 + $0x8] sm:$0xf]
        %v1311 = vld [vmem:[%s494 + $0xc] sm:$0xf]
        %v1312 = vld [vmem:[%s494 + $0x10] sm:$0xf]
        %v1313 = vld [vmem:[%s494 + $0x14] sm:$0xf]
        %v1314 = vld [vmem:[%s494 + $0x18] sm:$0xf]
        %v1315 = vld [vmem:[%s494 + $0x1c] sm:$0xf]
        %v1316 = vlaneseq
        %v1317 = vshrl.u32 %v1316, 7
        %v1318 = vsub.s32 1, %v1317
        %v1319 = vrot.slane %v504, %v1318
        %v1328 = vunpack.c.l.b16 %v1308
        %v1329 = vunpack.c.l.b16 %v1309
        %v1330 = vunpack.c.l.b16 %v1310
        %v1331 = vunpack.c.l.b16 %v1311
        %v1332 = vunpack.c.l.b16 %v1312
        %v1333 = vunpack.c.l.b16 %v1313
        %v1334 = vunpack.c.l.b16 %v1314
        %v1335 = vunpack.c.l.b16 %v1315
        %v1336 = vpack.c.b16 %v1329, %v1328
        %v1337 = vpack.c.b16 %v1331, %v1330
        %v1338 = vpack.c.b16 %v1333, %v1332
        %v1339 = vpack.c.b16 %v1335, %v1334
        %vm1344 = vcmask 523264
        %v1346 = vsel %vm1344, %v1307, 0
        %1348 = vmatprep.subr.bf16.mxu0 0
        %1349 = vmatpush1.bf16.msra.mxu0 0
        %1350 = vmatprep.subr.bf16.mxu0 0
        %1351 = vmatpush1.bf16.msra.mxu0 0
        %1352 = vmatprep.subr.bf16.mxu0 0
        %1353 = vmatpush1.bf16.msra.mxu0 0
        %1354 = vmatprep.subr.bf16.mxu0 0
        %1355 = vmatpush1.bf16.msra.mxu0 0
        %1356 = vmatprep.subr.bf16.mxu0 0
        %1357 = vmatpush1.bf16.msra.mxu0 %v1339
        %1358 = vmatprep.subr.bf16.mxu0 0
        %1359 = vmatpush1.bf16.msra.mxu0 %v1338
        %1360 = vmatprep.subr.bf16.mxu0 0
        %1361 = vmatpush1.bf16.msra.mxu0 %v1337
        %1362 = vmatprep.subr.bf16.mxu0 0
        %1363 = vmatpush1.bf16.msra.mxu0 %v1336
        %1364 = vmatprep.subr.bf16.mxu0 0
        %1365 = vmatpush2.bf16.msra.mxu0 0
        %1366 = vmatprep.subr.bf16.mxu0 0
        %1367 = vmatpush2.bf16.msra.mxu0 0
        %1368 = vmatprep.subr.bf16.mxu0 0
        %1369 = vmatpush2.bf16.msra.mxu0 0
        %1370 = vmatprep.subr.bf16.mxu0 0
        %1371 = vmatpush2.bf16.msra.mxu0 0
        %1372 = vmatprep.subr.bf16.mxu0 0
        %1373 = vmatpush2.bf16.msra.mxu0 0
        %1374 = vmatprep.subr.bf16.mxu0 0
        %1375 = vmatpush2.bf16.msra.mxu0 0
        %1376 = vmatprep.subr.bf16.mxu0 0
        %1377 = vmatpush2.bf16.msra.mxu0 0
        %1378 = vmatprep.subr.bf16.mxu0 0
        %1379 = vmatpush2.bf16.msra.mxu0 0
        %1380 = vmatprep.mubr.bf16.mxu0 0
        %1381 = vmatmul.mubr.bf16.gmra.mxu0 %v1346
        %v1382 = vpop.f32.mrf.mxu0
        %v1383 = vadd.f32 %v1319, %v1382
        %v1384 = vpop.f32.mrf.mxu0
        %v1385 = vpop.f32.mrf.mxu0
        %v1386 = vpop.f32.mrf.mxu0
        %1387 = vdwg.mxu0
        %v1388 = vadd.f32 %v1238, %v1383
        %v1389 = vsel %vm523, %v1388, 0.0
        %1390 = vadd.xlane.f32.xlu0 %v1389
        %v1391 = vpop.xlane.xlu0 %1390
        %v1392 = vmul.f32 %v1391, %v1218
        %v1393 = vsub.f32 %v1388, %v1392
        %v1394 = vmul.f32 %v1393, %v1393
        %v1395 = vsel %vm523, %v1394, 0.0
        %1396 = vadd.xlane.f32.xlu0 %v1395
        %v1397 = vpop.xlane.xlu0 %1396
        %v1398 = vmul.f32 %v1397, %v1218
        %v1399 = vadd.f32 %v1398, 1e-05
        %v1400 = vrsqrt.pop %v1399
        %v1401 = vmul.f32 %v1393, %v1400
        %v1402 = vlaneseq
        %v1403 = vshrl.u32 %v1402, 7
        %v1404 = vsub.s32 4, %v1403
        %v1405 = vrot.slane %v504, %v1404
        %v1406 = vmul.f32 %v1401, %v1405
        %v1407 = vlaneseq
        %v1408 = vshrl.u32 %v1407, 7
        %v1409 = vsub.s32 5, %v1408
        %v1410 = vrot.slane %v504, %v1409
        %v1411 = vadd.f32 %v1406, %v1410
        %1412 = vst.msk [vmem:[%s471] sm:$0xff] %vm523, %v1411
        %s1413 = sand.u32 %s256, 1
        %s1414 = scalar_lea.sflag [#allocation4], %s1413
        %s1415 = sand.u32 %s256, 1
        %s1416 = smul.addr %s1415, 8
        %s1417 = scalar_lea.vmem [#allocation8], %s1416
        // Predicated region
        $region69: #{tpu_custom_call.1} parent=51 // pred_check
          %p1418 = pneg %p266
        $region70: #{tpu_custom_call.1} parent=51 // pred_check_branch
          %1420 = sbr.rel (%p1418) target = $region72
        $region71: #{tpu_custom_call.1} parent=51 // pred_region
          %s1422 = ssub.s32 128, 128
          %1423 = vsyncadd %s1414, %s1422
          %s1424 = smul.addr %s32, 128
          %s1425 = scalar_lea.hbm %s8, %s1424
          %s1427 = sshll.u32 %s1417, 4
          %s1428 = int_to_ptr.vmem [resolvable:$true] %s1427
          %1430 = dma.vmem_to_hbm [thread:$0]  %s1428, 128, %s1425, %s1414
        $region72: #{tpu_custom_call.1} parent=51 // pred_fallthru
          _
      $region52: #{tpu_custom_call.1} parent=5 // pred_fallthru
        _
      %p1431 = scmp.le.s32.totalorder 2, %s23
      // Predicated region
      $region73: #{tpu_custom_call.1} parent=5 // pred_check
        %p1432 = pneg %p1431
      $region74: #{tpu_custom_call.1} parent=5 // pred_check_branch
        %1434 = sbr.rel (%p1432) target = $region76
      $region75: #{tpu_custom_call.1} parent=5 // pred_region
        %s1435 = ssub.s32 %s23, 2
        // Predicated region
        $region77: #{tpu_custom_call.1} parent=75 // pred_check
          %p1436 = pneg %p272
        $region78: #{tpu_custom_call.1} parent=75 // pred_check_branch
          %1438 = sbr.rel (%p1436) target = $region80
        $region79: #{tpu_custom_call.1} parent=75 // pred_region
          %s1439 = sand.u32 %s257, 1
          %s1440 = scalar_lea.sflag [#allocation4], %s1439
          %s1441 = sand.u32 %s257, 1
          %s1442 = smul.addr %s1441, 8
          %s1443 = scalar_lea.vmem [#allocation8], %s1442
          %1444 = dma.done %s1440, 128
        $region80: #{tpu_custom_call.1} parent=75 // pred_fallthru
          _
      $region76: #{tpu_custom_call.1} parent=5 // pred_fallthru
        _
    $region6: #{tpu_custom_call.1} parent=1 // loop_footer
      %s27 = sadd.s32 1, %s23
    $region7: #{tpu_custom_call.1} parent=1 // loop_footer_branch
      %22 = sbr.rel target = $region3
    $region8: #{tpu_custom_call.1} parent=1 // loop_exit
      _
    %1445 = vsyncpa [#allocation3], 1
    %s1446 = scalar_lea.sflag [#allocation3], 1
    %1447 = vsyncpa %s1446, 1
    %1448 = vsyncpa [#allocation6], 1
    %s1449 = scalar_lea.sflag [#allocation6], 1
    %1450 = vsyncpa %s1449, 1
    %1451 = vsyncpa [#allocation4], 1
    %s1452 = scalar_lea.sflag [#allocation4], 1
    %1453 = vsyncpa %s1452, 1

</llo_original>
